<compile_context>
chip_gen: v5e
topology: v5e:2x2
jax: 0.10.0
libtpu: 0.0.40
codegen_flags: <defaults>
</compile_context>

<pallas_src>
import functools

import jax
import jax.numpy as jnp
import numpy as np
from jax.experimental import pallas as pl
from jax.experimental.pallas import tpu as pltpu


def _cross_attn_kernel(xq_ref, xkv_ref,
                       gq_ref, bq_ln_ref, gkv_ref, bkv_ln_ref,
                       wq_ref, bq_ref, wk_ref, bk_ref,
                       wv_ref, bv_ref, wo_ref, bo_ref,
                       out_ref,
                       xqn_sc, xkvn_sc, acc_sc,
                       *, dp_scale):
    h = pl.program_id(1)
    bt, n, dq = xq_ref.shape
    _, l, dkv = xkv_ref.shape

    # ---- once per batch tile (first head): LayerNorms + accumulator init ----
    @pl.when(h == 0)
    def _():
        def layer_norm(x, gamma, beta):
            mu = jnp.mean(x, axis=-1, keepdims=True)
            xc = x - mu
            var = jnp.mean(xc * xc, axis=-1, keepdims=True)
            return xc * jax.lax.rsqrt(var + 1e-5) * gamma + beta

        xq = xq_ref[...].reshape(bt * n, dq).astype(jnp.float32)
        xkv = xkv_ref[...].reshape(bt * l, dkv).astype(jnp.float32)
        xqn_sc[...] = layer_norm(xq, gq_ref[...], bq_ln_ref[...]).astype(jnp.bfloat16)
        xkvn_sc[...] = layer_norm(xkv, gkv_ref[...], bkv_ln_ref[...]).astype(jnp.bfloat16)
        acc_sc[...] = jnp.zeros_like(acc_sc)

    # ---- per-head projections: bf16 MXU operands, f32 accumulation ----------
    q = jnp.dot(xqn_sc[...], wq_ref[0], preferred_element_type=jnp.float32) + bq_ref[0]
    k = jnp.dot(xkvn_sc[...], wk_ref[0], preferred_element_type=jnp.float32) + bk_ref[0]
    v = jnp.dot(xkvn_sc[...], wv_ref[0], preferred_element_type=jnp.float32) + bv_ref[0]

    c_qk = q.shape[-1]
    c_v = v.shape[-1]

    # fold dp_scale into q (f32), reshape leading dim back to (bt, ...), cast bf16
    q = (q * dp_scale).reshape(bt, n, c_qk).astype(jnp.bfloat16)
    k = k.reshape(bt, l, c_qk).astype(jnp.bfloat16)
    v = v.reshape(bt, l, c_v).astype(jnp.bfloat16)

    # ---- attention for this head, batched over the folded batch tile --------
    s = jnp.einsum('bnc,blc->bnl', q, k, preferred_element_type=jnp.float32)
    s = s - jnp.max(s, axis=-1, keepdims=True)
    p = jnp.exp(s)
    p = p * pl.reciprocal(jnp.sum(p, axis=-1, keepdims=True), approx=True)

    o = jnp.einsum('bnl,blc->bnc', p.astype(jnp.bfloat16), v,
                   preferred_element_type=jnp.float32)            # (bt, n, c_v)
    o = o.reshape(bt * n, c_v).astype(jnp.bfloat16)

    # per-head slice of the output projection; summing over heads == concat+proj
    acc_sc[...] += jnp.dot(o, wo_ref[0], preferred_element_type=jnp.float32)

    # ---- last head: add output bias, write lane-dense slab ------------------
    @pl.when(h == pl.num_programs(1) - 1)
    def _():
        out = acc_sc[...] + bo_ref[...]
        out_ref[...] = out.reshape(bt, n, -1).astype(out_ref.dtype)


def _pick_batch_tile(batch, n_rows, max_rows=256):
    """Largest divisor Bt of `batch` with Bt*n_rows <= max_rows, preferring an
    even grid extent (v7x has 2 TensorCores)."""
    divisors = [d for d in range(1, batch + 1) if batch % d == 0]
    fits = [d for d in divisors if d * n_rows <= max_rows] or [1]
    even_grid = [d for d in fits if (batch // d) % 2 == 0]
    return max(even_grid) if even_grid else max(fits)


def cross_attention_pallas(x_q, x_kv, params, num_heads):
    B, N, Dq = x_q.shape
    _, L, Dkv = x_kv.shape
    H = num_heads
    QK = params["wq"].shape[1]
    V = params["wv"].shape[1]
    Dout = params["wo"].shape[1]
    if QK % H != 0 or V % H != 0:
        raise ValueError("num_qk_channels / num_v_channels must be divisible by num_heads")
    c_qk, c_v = QK // H, V // H
    dp_scale = float(c_qk ** -0.5)

    Bt = _pick_batch_tile(B, N)
    n_btiles = B // Bt

    # Per-head weight layout (head leading), MXU operands pre-cast to bf16.
    def w_heads(w, c):      # (In, H*c) -> (H, In, c), bf16
        return jnp.transpose(w.reshape(w.shape[0], H, c), (1, 0, 2)).astype(jnp.bfloat16)

    def b_heads(b, c):      # (1, H*c) -> (H, 1, c), keep f32 (added post-matmul)
        return b.reshape(H, 1, c)

    wq_h = w_heads(params["wq"], c_qk)
    wk_h = w_heads(params["wk"], c_qk)
    wv_h = w_heads(params["wv"], c_v)
    wo_h = params["wo"].reshape(H, c_v, Dout).astype(jnp.bfloat16)
    bq_h = b_heads(params["bq"], c_qk)
    bk_h = b_heads(params["bk"], c_qk)
    bv_h = b_heads(params["bv"], c_v)

    kernel = functools.partial(_cross_attn_kernel, dp_scale=dp_scale)

    def const2d(arr):
        return pl.BlockSpec(arr.shape, lambda i, h: (0, 0))

    def per_head(arr):
        return pl.BlockSpec((1,) + arr.shape[1:], lambda i, h: (h, 0, 0))

    in_specs = [
        pl.BlockSpec((Bt, N, Dq), lambda i, h: (i, 0, 0)),
        pl.BlockSpec((Bt, L, Dkv), lambda i, h: (i, 0, 0)),
        const2d(params["gq"]), const2d(params["bq_ln"]),
        const2d(params["gkv"]), const2d(params["bkv_ln"]),
        per_head(wq_h), per_head(bq_h),
        per_head(wk_h), per_head(bk_h),
        per_head(wv_h), per_head(bv_h),
        per_head(wo_h), const2d(params["bo"]),
    ]
    out_spec = pl.BlockSpec((Bt, N, Dout), lambda i, h: (i, 0, 0))

    return pl.pallas_call(
        kernel,
        out_shape=jax.ShapeDtypeStruct((B, N, Dout), x_q.dtype),
        grid=(n_btiles, H),
        in_specs=in_specs,
        out_specs=out_spec,
        scratch_shapes=[
            pltpu.VMEM((Bt * N, Dq), jnp.bfloat16),   # cached LayerNorm(x_q)
            pltpu.VMEM((Bt * L, Dkv), jnp.bfloat16),  # cached LayerNorm(x_kv)
            pltpu.VMEM((Bt * N, Dout), jnp.float32),  # output accumulator over heads
        ],
        compiler_params=pltpu.CompilerParams(
            dimension_semantics=("parallel", "arbitrary")),
    )(x_q, x_kv,
      params["gq"], params["bq_ln"], params["gkv"], params["bkv_ln"],
      wq_h, bq_h, wk_h, bk_h, wv_h, bv_h, wo_h, params["bo"])


def cross_attention_ref(x_q, x_kv, params, num_heads):
    """Pure-JAX (f32) reference mirroring the PyTorch module."""
    def layer_norm(x, g, b):
        mu = jnp.mean(x, axis=-1, keepdims=True)
        var = jnp.mean((x - mu) ** 2, axis=-1, keepdims=True)
        return (x - mu) / jnp.sqrt(var + 1e-5) * g + b

    xq = layer_norm(x_q, params["gq"], params["bq_ln"])
    xkv = layer_norm(x_kv, params["gkv"], params["bkv_ln"])

    q = xq @ params["wq"] + params["bq"]
    k = xkv @ params["wk"] + params["bk"]
    v = xkv @ params["wv"] + params["bv"]

    B, N, QK = q.shape
    L = k.shape[1]
    V = v.shape[-1]
    H = num_heads
    dp_scale = (QK // H) ** -0.5

    qh = q.reshape(B, N, H, QK // H).transpose(0, 2, 1, 3)
    kh = k.reshape(B, L, H, QK // H).transpose(0, 2, 1, 3)
    vh = v.reshape(B, L, H, V // H).transpose(0, 2, 1, 3)

    attn = jnp.einsum("bhic,bhjc->bhij", qh, kh) * dp_scale
    attn = jax.nn.softmax(attn, axis=-1)
    o = jnp.einsum("bhij,bhjc->bhic", attn, vh)
    o = o.transpose(0, 2, 1, 3).reshape(B, N, V)
    return o @ params["wo"] + params["bo"]


def init_params(key, num_heads, num_q_input_channels, num_kv_input_channels,
                num_qk_channels=None, num_v_channels=None,
                num_output_channels=None):
    if num_qk_channels is None:
        num_qk_channels = num_q_input_channels
    if num_v_channels is None:
        num_v_channels = num_qk_channels
    if num_output_channels is None:
        num_output_channels = num_q_input_channels

    ks = jax.random.split(key, 8)
    s = 0.05
    return {
        # LayerNorm params (stored (1, C) for lane-friendly broadcast)
        "gq": jnp.ones((1, num_q_input_channels), jnp.float32),
        "bq_ln": jnp.zeros((1, num_q_input_channels), jnp.float32),
        "gkv": jnp.ones((1, num_kv_input_channels), jnp.float32),
        "bkv_ln": jnp.zeros((1, num_kv_input_channels), jnp.float32),
        # Linear weights stored (in, out) = torch weight.T
        "wq": s * jax.random.normal(ks[0], (num_q_input_channels, num_qk_channels), jnp.float32),
        "bq": s * jax.random.normal(ks[1], (1, num_qk_channels), jnp.float32),
        "wk": s * jax.random.normal(ks[2], (num_kv_input_channels, num_qk_channels), jnp.float32),
        "bk": s * jax.random.normal(ks[3], (1, num_qk_channels), jnp.float32),
        "wv": s * jax.random.normal(ks[4], (num_kv_input_channels, num_v_channels), jnp.float32),
        "bv": s * jax.random.normal(ks[5], (1, num_v_channels), jnp.float32),
        "wo": s * jax.random.normal(ks[6], (num_v_channels, num_output_channels), jnp.float32),
        "bo": s * jax.random.normal(ks[7], (1, num_output_channels), jnp.float32),
    }


if __name__ == "__main__":
    key = jax.random.PRNGKey(0)
    kx, kkv, kp = jax.random.split(key, 3)

    # small shapes consistent with the module's forward
    B, N, L = 8, 8, 16
    num_heads = 4
    num_q_input_channels = 128    # => Dout = 128 (lane-dense output slab)
    num_kv_input_channels = 64

    x_q = jax.random.normal(kx, (B, N, num_q_input_channels), jnp.float32)
    x_kv = jax.random.normal(kkv, (B, L, num_kv_input_channels), jnp.float32)

    params = init_params(kp, num_heads, num_q_input_channels, num_kv_input_channels)

    out = jax.block_until_ready(cross_attention_pallas(x_q, x_kv, params, num_heads))
    ref = jax.block_until_ready(cross_attention_ref(x_q, x_kv, params, num_heads))
    np.testing.assert_allclose(np.asarray(out), np.asarray(ref), rtol=2e-2, atol=2e-2)

    print("KERNEL_OK")
</pallas_src>

<mosaic_0001>
module attributes {stable_mosaic.version = 11 : i64} {
  func.func @_cross_attn_kernel(%arg0: i32, %arg1: i32, %arg2: memref<4x8x128xf32, #tpu.memory_space<vmem>>, %arg3: memref<4x16x64xf32, #tpu.memory_space<vmem>>, %arg4: memref<1x128xf32, #tpu.memory_space<vmem>>, %arg5: memref<1x128xf32, #tpu.memory_space<vmem>>, %arg6: memref<1x64xf32, #tpu.memory_space<vmem>>, %arg7: memref<1x64xf32, #tpu.memory_space<vmem>>, %arg8: memref<1x128x32xbf16, #tpu.memory_space<vmem>>, %arg9: memref<1x1x32xf32, #tpu.memory_space<vmem>>, %arg10: memref<1x64x32xbf16, #tpu.memory_space<vmem>>, %arg11: memref<1x1x32xf32, #tpu.memory_space<vmem>>, %arg12: memref<1x64x32xbf16, #tpu.memory_space<vmem>>, %arg13: memref<1x1x32xf32, #tpu.memory_space<vmem>>, %arg14: memref<1x32x128xbf16, #tpu.memory_space<vmem>>, %arg15: memref<1x128xf32, #tpu.memory_space<vmem>>, %arg16: memref<4x8x128xf32, #tpu.memory_space<vmem>>, %arg17: memref<32x128xbf16, #tpu.memory_space<vmem>>, %arg18: memref<64x64xbf16, #tpu.memory_space<vmem>>, %arg19: memref<32x128xf32, #tpu.memory_space<vmem>>) attributes {dimension_semantics = [#tpu.dimension_semantics<parallel>, #tpu.dimension_semantics<arbitrary>], iteration_bounds = array<i64: 2, 4>, scalar_prefetch = 0 : i64, scratch_operands = 3 : i64, tpu.core_type = #tpu.core_type<tc>, window_params = [{transform_indices = @transform_0, window_bounds = array<i64: 4, 8, 128>}, {transform_indices = @transform_1, window_bounds = array<i64: 4, 16, 64>}, {pipeline_mode = #tpu.pipeline_mode<synchronous>, transform_indices = @transform_2, window_bounds = array<i64: 1, 128>}, {pipeline_mode = #tpu.pipeline_mode<synchronous>, transform_indices = @transform_3, window_bounds = array<i64: 1, 128>}, {pipeline_mode = #tpu.pipeline_mode<synchronous>, transform_indices = @transform_4, window_bounds = array<i64: 1, 64>}, {pipeline_mode = #tpu.pipeline_mode<synchronous>, transform_indices = @transform_5, window_bounds = array<i64: 1, 64>}, {transform_indices = @transform_6, window_bounds = array<i64: 1, 128, 32>}, {transform_indices = @transform_7, window_bounds = array<i64: 1, 1, 32>}, {transform_indices = @transform_8, window_bounds = array<i64: 1, 64, 32>}, {transform_indices = @transform_9, window_bounds = array<i64: 1, 1, 32>}, {transform_indices = @transform_10, window_bounds = array<i64: 1, 64, 32>}, {transform_indices = @transform_11, window_bounds = array<i64: 1, 1, 32>}, {transform_indices = @transform_12, window_bounds = array<i64: 1, 32, 128>}, {pipeline_mode = #tpu.pipeline_mode<synchronous>, transform_indices = @transform_13, window_bounds = array<i64: 1, 128>}, {transform_indices = @transform_14, window_bounds = array<i64: 4, 8, 128>}]} {
    %c0_i32 = arith.constant 0 : i32
    %0 = arith.cmpi eq, %arg1, %c0_i32 : i32
    %1 = arith.extui %0 : i1 to i32
    %c0_i32_0 = arith.constant 0 : i32
    %2 = arith.cmpi ne, %1, %c0_i32_0 : i32
    scf.if %2 {
      %c0_40 = arith.constant 0 : index
      %c0_41 = arith.constant 0 : index
      %c0_42 = arith.constant 0 : index
      %59 = vector.load %arg2[%c0_40, %c0_41, %c0_42] : memref<4x8x128xf32, #tpu.memory_space<vmem>>, vector<4x8x128xf32>
      %60 = vector.shape_cast %59 : vector<4x8x128xf32> to vector<32x128xf32>
      %c0_43 = arith.constant 0 : index
      %c0_44 = arith.constant 0 : index
      %c0_45 = arith.constant 0 : index
      %61 = vector.load %arg3[%c0_43, %c0_44, %c0_45] : memref<4x16x64xf32, #tpu.memory_space<vmem>>, vector<4x16x64xf32>
      %62 = vector.shape_cast %61 : vector<4x16x64xf32> to vector<64x64xf32>
      %c0_46 = arith.constant 0 : index
      %c0_47 = arith.constant 0 : index
      %63 = vector.load %arg4[%c0_46, %c0_47] : memref<1x128xf32, #tpu.memory_space<vmem>>, vector<1x128xf32>
      %c0_48 = arith.constant 0 : index
      %c0_49 = arith.constant 0 : index
      %64 = vector.load %arg5[%c0_48, %c0_49] : memref<1x128xf32, #tpu.memory_space<vmem>>, vector<1x128xf32>
      %cst_50 = arith.constant dense<0.000000e+00> : vector<32xf32>
      %65 = vector.multi_reduction <add>, %60, %cst_50 [1] : vector<32x128xf32> to vector<32xf32>
      %66 = vector.shape_cast %65 : vector<32xf32> to vector<32x1xf32>
      %cst_51 = arith.constant 1.280000e+02 : f32
      %67 = vector.broadcast %cst_51 : f32 to vector<32x1xf32>
      %68 = arith.divf %66, %67 : vector<32x1xf32>
      %69 = vector.broadcast %68 : vector<32x1xf32> to vector<32x128xf32>
      %70 = arith.subf %60, %69 : vector<32x128xf32>
      %71 = arith.mulf %70, %70 : vector<32x128xf32>
      %cst_52 = arith.constant dense<0.000000e+00> : vector<32xf32>
      %72 = vector.multi_reduction <add>, %71, %cst_52 [1] : vector<32x128xf32> to vector<32xf32>
      %73 = vector.shape_cast %72 : vector<32xf32> to vector<32x1xf32>
      %cst_53 = arith.constant 1.280000e+02 : f32
      %74 = vector.broadcast %cst_53 : f32 to vector<32x1xf32>
      %75 = arith.divf %73, %74 : vector<32x1xf32>
      %cst_54 = arith.constant 9.99999974E-6 : f32
      %76 = vector.broadcast %cst_54 : f32 to vector<32x1xf32>
      %77 = arith.addf %75, %76 : vector<32x1xf32>
      %78 = math.rsqrt %77 : vector<32x1xf32>
      %79 = vector.broadcast %78 : vector<32x1xf32> to vector<32x128xf32>
      %80 = arith.mulf %70, %79 : vector<32x128xf32>
      %81 = vector.broadcast %63 : vector<1x128xf32> to vector<32x128xf32>
      %82 = arith.mulf %80, %81 : vector<32x128xf32>
      %83 = vector.broadcast %64 : vector<1x128xf32> to vector<32x128xf32>
      %84 = arith.addf %82, %83 : vector<32x128xf32>
      %85 = arith.truncf %84 : vector<32x128xf32> to vector<32x128xbf16>
      %c0_55 = arith.constant 0 : index
      %c0_56 = arith.constant 0 : index
      %86 = vector.load %arg17[%c0_55, %c0_56] : memref<32x128xbf16, #tpu.memory_space<vmem>>, vector<32x128xbf16>
      tpu.vector_store %arg17[%c0_55, %c0_56], %85 {strides = array<i32>} : memref<32x128xbf16, #tpu.memory_space<vmem>>, vector<32x128xbf16>,
      %c0_57 = arith.constant 0 : index
      %c0_58 = arith.constant 0 : index
      %87 = vector.load %arg6[%c0_57, %c0_58] : memref<1x64xf32, #tpu.memory_space<vmem>>, vector<1x64xf32>
      %c0_59 = arith.constant 0 : index
      %c0_60 = arith.constant 0 : index
      %88 = vector.load %arg7[%c0_59, %c0_60] : memref<1x64xf32, #tpu.memory_space<vmem>>, vector<1x64xf32>
      %cst_61 = arith.constant dense<0.000000e+00> : vector<64xf32>
      %89 = vector.multi_reduction <add>, %62, %cst_61 [1] : vector<64x64xf32> to vector<64xf32>
      %90 = vector.shape_cast %89 : vector<64xf32> to vector<64x1xf32>
      %cst_62 = arith.constant 6.400000e+01 : f32
      %91 = vector.broadcast %cst_62 : f32 to vector<64x1xf32>
      %92 = arith.divf %90, %91 : vector<64x1xf32>
      %93 = vector.broadcast %92 : vector<64x1xf32> to vector<64x64xf32>
      %94 = arith.subf %62, %93 : vector<64x64xf32>
      %95 = arith.mulf %94, %94 : vector<64x64xf32>
      %cst_63 = arith.constant dense<0.000000e+00> : vector<64xf32>
      %96 = vector.multi_reduction <add>, %95, %cst_63 [1] : vector<64x64xf32> to vector<64xf32>
      %97 = vector.shape_cast %96 : vector<64xf32> to vector<64x1xf32>
      %cst_64 = arith.constant 6.400000e+01 : f32
      %98 = vector.broadcast %cst_64 : f32 to vector<64x1xf32>
      %99 = arith.divf %97, %98 : vector<64x1xf32>
      %cst_65 = arith.constant 9.99999974E-6 : f32
      %100 = vector.broadcast %cst_65 : f32 to vector<64x1xf32>
      %101 = arith.addf %99, %100 : vector<64x1xf32>
      %102 = math.rsqrt %101 : vector<64x1xf32>
      %103 = vector.broadcast %102 : vector<64x1xf32> to vector<64x64xf32>
      %104 = arith.mulf %94, %103 : vector<64x64xf32>
      %105 = vector.broadcast %87 : vector<1x64xf32> to vector<64x64xf32>
      %106 = arith.mulf %104, %105 : vector<64x64xf32>
      %107 = vector.broadcast %88 : vector<1x64xf32> to vector<64x64xf32>
      %108 = arith.addf %106, %107 : vector<64x64xf32>
      %109 = arith.truncf %108 : vector<64x64xf32> to vector<64x64xbf16>
      %c0_66 = arith.constant 0 : index
      %c0_67 = arith.constant 0 : index
      %110 = vector.load %arg18[%c0_66, %c0_67] : memref<64x64xbf16, #tpu.memory_space<vmem>>, vector<64x64xbf16>
      tpu.vector_store %arg18[%c0_66, %c0_67], %109 {strides = array<i32>} : memref<64x64xbf16, #tpu.memory_space<vmem>>, vector<64x64xbf16>,
      %cst_68 = arith.constant 0.000000e+00 : f32
      %111 = vector.broadcast %cst_68 : f32 to vector<32x128xf32>
      %c0_69 = arith.constant 0 : index
      %c0_70 = arith.constant 0 : index
      %112 = vector.load %arg19[%c0_69, %c0_70] : memref<32x128xf32, #tpu.memory_space<vmem>>, vector<32x128xf32>
      tpu.vector_store %arg19[%c0_69, %c0_70], %111 {strides = array<i32>} : memref<32x128xf32, #tpu.memory_space<vmem>>, vector<32x128xf32>,
    } else {
    }
    %c0 = arith.constant 0 : index
    %c0_1 = arith.constant 0 : index
    %3 = vector.load %arg17[%c0, %c0_1] : memref<32x128xbf16, #tpu.memory_space<vmem>>, vector<32x128xbf16>
    %c0_2 = arith.constant 0 : index
    %c0_3 = arith.constant 0 : index
    %c0_4 = arith.constant 0 : index
    %4 = vector.load %arg8[%c0_2, %c0_3, %c0_4] : memref<1x128x32xbf16, #tpu.memory_space<vmem>>, vector<1x128x32xbf16>
    %5 = vector.shape_cast %4 : vector<1x128x32xbf16> to vector<128x32xbf16>
    %cst = arith.constant dense<0.000000e+00> : vector<32x32xf32>
    %6 = tpu.matmul %3, %5, %cst {dimension_numbers = #tpu.dot_dimension_numbers<[1], [0], [0], [1], [0, 0, 1, 1], [], []>} : vector<32x128xbf16>, vector<128x32xbf16>, vector<32x32xf32> -> vector<32x32xf32>
    %c0_5 = arith.constant 0 : index
    %c0_6 = arith.constant 0 : index
    %c0_7 = arith.constant 0 : index
    %7 = vector.load %arg9[%c0_5, %c0_6, %c0_7] : memref<1x1x32xf32, #tpu.memory_space<vmem>>, vector<1x1x32xf32>
    %8 = vector.shape_cast %7 : vector<1x1x32xf32> to vector<1x32xf32>
    %9 = vector.broadcast %8 : vector<1x32xf32> to vector<32x32xf32>
    %10 = arith.addf %6, %9 : vector<32x32xf32>
    %c0_8 = arith.constant 0 : index
    %c0_9 = arith.constant 0 : index
    %11 = vector.load %arg18[%c0_8, %c0_9] : memref<64x64xbf16, #tpu.memory_space<vmem>>, vector<64x64xbf16>
    %c0_10 = arith.constant 0 : index
    %c0_11 = arith.constant 0 : index
    %c0_12 = arith.constant 0 : index
    %12 = vector.load %arg10[%c0_10, %c0_11, %c0_12] : memref<1x64x32xbf16, #tpu.memory_space<vmem>>, vector<1x64x32xbf16>
    %13 = vector.shape_cast %12 : vector<1x64x32xbf16> to vector<64x32xbf16>
    %cst_13 = arith.constant dense<0.000000e+00> : vector<64x32xf32>
    %14 = tpu.matmul %11, %13, %cst_13 {dimension_numbers = #tpu.dot_dimension_numbers<[1], [0], [0], [1], [0, 0, 1, 1], [], []>} : vector<64x64xbf16>, vector<64x32xbf16>, vector<64x32xf32> -> vector<64x32xf32>
    %c0_14 = arith.constant 0 : index
    %c0_15 = arith.constant 0 : index
    %c0_16 = arith.constant 0 : index
    %15 = vector.load %arg11[%c0_14, %c0_15, %c0_16] : memref<1x1x32xf32, #tpu.memory_space<vmem>>, vector<1x1x32xf32>
    %16 = vector.shape_cast %15 : vector<1x1x32xf32> to vector<1x32xf32>
    %17 = vector.broadcast %16 : vector<1x32xf32> to vector<64x32xf32>
    %18 = arith.addf %14, %17 : vector<64x32xf32>
    %c0_17 = arith.constant 0 : index
    %c0_18 = arith.constant 0 : index
    %19 = vector.load %arg18[%c0_17, %c0_18] : memref<64x64xbf16, #tpu.memory_space<vmem>>, vector<64x64xbf16>
    %c0_19 = arith.constant 0 : index
    %c0_20 = arith.constant 0 : index
    %c0_21 = arith.constant 0 : index
    %20 = vector.load %arg12[%c0_19, %c0_20, %c0_21] : memref<1x64x32xbf16, #tpu.memory_space<vmem>>, vector<1x64x32xbf16>
    %21 = vector.shape_cast %20 : vector<1x64x32xbf16> to vector<64x32xbf16>
    %cst_22 = arith.constant dense<0.000000e+00> : vector<64x32xf32>
    %22 = tpu.matmul %19, %21, %cst_22 {dimension_numbers = #tpu.dot_dimension_numbers<[1], [0], [0], [1], [0, 0, 1, 1], [], []>} : vector<64x64xbf16>, vector<64x32xbf16>, vector<64x32xf32> -> vector<64x32xf32>
    %c0_23 = arith.constant 0 : index
    %c0_24 = arith.constant 0 : index
    %c0_25 = arith.constant 0 : index
    %23 = vector.load %arg13[%c0_23, %c0_24, %c0_25] : memref<1x1x32xf32, #tpu.memory_space<vmem>>, vector<1x1x32xf32>
    %24 = vector.shape_cast %23 : vector<1x1x32xf32> to vector<1x32xf32>
    %25 = vector.broadcast %24 : vector<1x32xf32> to vector<64x32xf32>
    %26 = arith.addf %22, %25 : vector<64x32xf32>
    %cst_26 = arith.constant 0.176776692 : f32
    %27 = vector.broadcast %cst_26 : f32 to vector<32x32xf32>
    %28 = arith.mulf %10, %27 : vector<32x32xf32>
    %29 = vector.shape_cast %28 : vector<32x32xf32> to vector<4x8x32xf32>
    %30 = arith.truncf %29 : vector<4x8x32xf32> to vector<4x8x32xbf16>
    %31 = vector.shape_cast %18 : vector<64x32xf32> to vector<4x16x32xf32>
    %32 = arith.truncf %31 : vector<4x16x32xf32> to vector<4x16x32xbf16>
    %33 = vector.shape_cast %26 : vector<64x32xf32> to vector<4x16x32xf32>
    %34 = arith.truncf %33 : vector<4x16x32xf32> to vector<4x16x32xbf16>
    "tpu.trace_start"() <{level = 10 : i32, message = "bnc,blc->bnl"}> : () -> ()
    %cst_27 = arith.constant dense<0.000000e+00> : vector<4x8x16xf32>
    %35 = tpu.matmul %30, %32, %cst_27 {dimension_numbers = #tpu.dot_dimension_numbers<[2], [2], [1], [1], [0, 0, 0, 1, 1, 1], [0], [0]>} : vector<4x8x32xbf16>, vector<4x16x32xbf16>, vector<4x8x16xf32> -> vector<4x8x16xf32>
    "tpu.trace_stop"() : () -> ()
    %cst_28 = arith.constant dense<0xFF800000> : vector<4x8xf32>
    %36 = vector.multi_reduction <maximumf>, %35, %cst_28 [2] : vector<4x8x16xf32> to vector<4x8xf32>
    %37 = vector.shape_cast %36 : vector<4x8xf32> to vector<4x8x1xf32>
    %38 = vector.broadcast %37 : vector<4x8x1xf32> to vector<4x8x16xf32>
    %39 = arith.subf %35, %38 : vector<4x8x16xf32>
    %40 = math.exp %39 : vector<4x8x16xf32>
    %cst_29 = arith.constant dense<0.000000e+00> : vector<4x8xf32>
    %41 = vector.multi_reduction <add>, %40, %cst_29 [2] : vector<4x8x16xf32> to vector<4x8xf32>
    %42 = vector.shape_cast %41 : vector<4x8xf32> to vector<4x8x1xf32>
    %43 = tpu.reciprocal %42 {approx = true} : vector<4x8x1xf32> -> vector<4x8x1xf32>
    %44 = vector.broadcast %43 : vector<4x8x1xf32> to vector<4x8x16xf32>
    %45 = arith.mulf %40, %44 : vector<4x8x16xf32>
    %46 = arith.truncf %45 : vector<4x8x16xf32> to vector<4x8x16xbf16>
    "tpu.trace_start"() <{level = 10 : i32, message = "bnl,blc->bnc"}> : () -> ()
    %cst_30 = arith.constant dense<0.000000e+00> : vector<4x8x32xf32>
    %47 = tpu.matmul %46, %34, %cst_30 {dimension_numbers = #tpu.dot_dimension_numbers<[2], [1], [1], [2], [0, 0, 0, 1, 1, 2], [0], [0]>} : vector<4x8x16xbf16>, vector<4x16x32xbf16>, vector<4x8x32xf32> -> vector<4x8x32xf32>
    "tpu.trace_stop"() : () -> ()
    %48 = vector.shape_cast %47 : vector<4x8x32xf32> to vector<32x32xf32>
    %49 = arith.truncf %48 : vector<32x32xf32> to vector<32x32xbf16>
    %c0_31 = arith.constant 0 : index
    %c0_32 = arith.constant 0 : index
    %50 = vector.load %arg19[%c0_31, %c0_32] : memref<32x128xf32, #tpu.memory_space<vmem>>, vector<32x128xf32>
    %c0_33 = arith.constant 0 : index
    %c0_34 = arith.constant 0 : index
    %c0_35 = arith.constant 0 : index
    %51 = vector.load %arg14[%c0_33, %c0_34, %c0_35] : memref<1x32x128xbf16, #tpu.memory_space<vmem>>, vector<1x32x128xbf16>
    %52 = vector.shape_cast %51 : vector<1x32x128xbf16> to vector<32x128xbf16>
    %cst_36 = arith.constant dense<0.000000e+00> : vector<32x128xf32>
    %53 = tpu.matmul %49, %52, %cst_36 {dimension_numbers = #tpu.dot_dimension_numbers<[1], [0], [0], [1], [0, 0, 1, 1], [], []>} : vector<32x32xbf16>, vector<32x128xbf16>, vector<32x128xf32> -> vector<32x128xf32>
    %54 = arith.addf %50, %53 : vector<32x128xf32>
    %c0_37 = arith.constant 0 : index
    %c0_38 = arith.constant 0 : index
    %55 = vector.load %arg19[%c0_37, %c0_38] : memref<32x128xf32, #tpu.memory_space<vmem>>, vector<32x128xf32>
    tpu.vector_store %arg19[%c0_37, %c0_38], %54 {strides = array<i32>} : memref<32x128xf32, #tpu.memory_space<vmem>>, vector<32x128xf32>,
    %c3_i32 = arith.constant 3 : i32
    %56 = arith.cmpi eq, %arg1, %c3_i32 : i32
    %57 = arith.extui %56 : i1 to i32
    %c0_i32_39 = arith.constant 0 : i32
    %58 = arith.cmpi ne, %57, %c0_i32_39 : i32
    scf.if %58 {
      %c0_40 = arith.constant 0 : index
      %c0_41 = arith.constant 0 : index
      %59 = vector.load %arg19[%c0_40, %c0_41] : memref<32x128xf32, #tpu.memory_space<vmem>>, vector<32x128xf32>
      %c0_42 = arith.constant 0 : index
      %c0_43 = arith.constant 0 : index
      %60 = vector.load %arg15[%c0_42, %c0_43] : memref<1x128xf32, #tpu.memory_space<vmem>>, vector<1x128xf32>
      %61 = vector.broadcast %60 : vector<1x128xf32> to vector<32x128xf32>
      %62 = arith.addf %59, %61 : vector<32x128xf32>
      %63 = vector.shape_cast %62 : vector<32x128xf32> to vector<4x8x128xf32>
      %c0_44 = arith.constant 0 : index
      %c0_45 = arith.constant 0 : index
      %c0_46 = arith.constant 0 : index
      %64 = vector.load %arg16[%c0_44, %c0_45, %c0_46] : memref<4x8x128xf32, #tpu.memory_space<vmem>>, vector<4x8x128xf32>
      tpu.vector_store %arg16[%c0_44, %c0_45, %c0_46], %63 {strides = array<i32>} : memref<4x8x128xf32, #tpu.memory_space<vmem>>, vector<4x8x128xf32>,
    } else {
    }
    return
  }
  func.func @transform_0(%arg0: i32, %arg1: i32) -> (i32, i32, i32) {
    %c0_i32 = arith.constant 0 : i32
    %c0_i32_0 = arith.constant 0 : i32
    %c0_i32_1 = arith.constant 0 : i32
    return %arg0, %c0_i32, %c0_i32_0 : i32, i32, i32
  }
  func.func @transform_1(%arg0: i32, %arg1: i32) -> (i32, i32, i32) {
    %c0_i32 = arith.constant 0 : i32
    %c0_i32_0 = arith.constant 0 : i32
    %c0_i32_1 = arith.constant 0 : i32
    return %arg0, %c0_i32, %c0_i32_0 : i32, i32, i32
  }
  func.func @transform_2(%arg0: i32, %arg1: i32) -> (i32, i32) {
    %c0_i32 = arith.constant 0 : i32
    %c0_i32_0 = arith.constant 0 : i32
    %c0_i32_1 = arith.constant 0 : i32
    return %c0_i32, %c0_i32_0 : i32, i32
  }
  func.func @transform_3(%arg0: i32, %arg1: i32) -> (i32, i32) {
    %c0_i32 = arith.constant 0 : i32
    %c0_i32_0 = arith.constant 0 : i32
    %c0_i32_1 = arith.constant 0 : i32
    return %c0_i32, %c0_i32_0 : i32, i32
  }
  func.func @transform_4(%arg0: i32, %arg1: i32) -> (i32, i32) {
    %c0_i32 = arith.constant 0 : i32
    %c0_i32_0 = arith.constant 0 : i32
    %c0_i32_1 = arith.constant 0 : i32
    return %c0_i32, %c0_i32_0 : i32, i32
  }
  func.func @transform_5(%arg0: i32, %arg1: i32) -> (i32, i32) {
    %c0_i32 = arith.constant 0 : i32
    %c0_i32_0 = arith.constant 0 : i32
    %c0_i32_1 = arith.constant 0 : i32
    return %c0_i32, %c0_i32_0 : i32, i32
  }
  func.func @transform_6(%arg0: i32, %arg1: i32) -> (i32, i32, i32) {
    %c0_i32 = arith.constant 0 : i32
    %c0_i32_0 = arith.constant 0 : i32
    %c0_i32_1 = arith.constant 0 : i32
    return %arg1, %c0_i32, %c0_i32_0 : i32, i32, i32
  }
  func.func @transform_7(%arg0: i32, %arg1: i32) -> (i32, i32, i32) {
    %c0_i32 = arith.constant 0 : i32
    %c0_i32_0 = arith.constant 0 : i32
    %c0_i32_1 = arith.constant 0 : i32
    return %arg1, %c0_i32, %c0_i32_0 : i32, i32, i32
  }
  func.func @transform_8(%arg0: i32, %arg1: i32) -> (i32, i32, i32) {
    %c0_i32 = arith.constant 0 : i32
    %c0_i32_0 = arith.constant 0 : i32
    %c0_i32_1 = arith.constant 0 : i32
    return %arg1, %c0_i32, %c0_i32_0 : i32, i32, i32
  }
  func.func @transform_9(%arg0: i32, %arg1: i32) -> (i32, i32, i32) {
    %c0_i32 = arith.constant 0 : i32
    %c0_i32_0 = arith.constant 0 : i32
    %c0_i32_1 = arith.constant 0 : i32
    return %arg1, %c0_i32, %c0_i32_0 : i32, i32, i32
  }
  func.func @transform_10(%arg0: i32, %arg1: i32) -> (i32, i32, i32) {
    %c0_i32 = arith.constant 0 : i32
    %c0_i32_0 = arith.constant 0 : i32
    %c0_i32_1 = arith.constant 0 : i32
    return %arg1, %c0_i32, %c0_i32_0 : i32, i32, i32
  }
  func.func @transform_11(%arg0: i32, %arg1: i32) -> (i32, i32, i32) {
    %c0_i32 = arith.constant 0 : i32
    %c0_i32_0 = arith.constant 0 : i32
    %c0_i32_1 = arith.constant 0 : i32
    return %arg1, %c0_i32, %c0_i32_0 : i32, i32, i32
  }
  func.func @transform_12(%arg0: i32, %arg1: i32) -> (i32, i32, i32) {
    %c0_i32 = arith.constant 0 : i32
    %c0_i32_0 = arith.constant 0 : i32
    %c0_i32_1 = arith.constant 0 : i32
    return %arg1, %c0_i32, %c0_i32_0 : i32, i32, i32
  }
  func.func @transform_13(%arg0: i32, %arg1: i32) -> (i32, i32) {
    %c0_i32 = arith.constant 0 : i32
    %c0_i32_0 = arith.constant 0 : i32
    %c0_i32_1 = arith.constant 0 : i32
    return %c0_i32, %c0_i32_0 : i32, i32
  }
  func.func @transform_14(%arg0: i32, %arg1: i32) -> (i32, i32, i32) {
    %c0_i32 = arith.constant 0 : i32
    %c0_i32_0 = arith.constant 0 : i32
    %c0_i32_1 = arith.constant 0 : i32
    return %arg0, %c0_i32, %c0_i32_0 : i32, i32, i32
  }
}

</mosaic_0001>

<llo_original>
// kernel: tpu_custom_call.1
$region0: #{tpu_custom_call.1}
  #allocation0 [shape = 'u32[]', space=smem, size = 0x4, offset = 0x4, fixed_abs, tag = 'smem constant byte address 0x4 - core index']
  #allocation1 [shape = 'u32[72,128]{1,0:T(1,128)}', space=vmem, size = 0x9000, scoped, tag = 'internal scratch']
  #allocation2 [shape = 'bf16[32,128]{1,0:T(8,128)(2,1)}', space=vmem, size = 0x2000, scoped, tag = 'scratch operand']
  #allocation3 [shape = 'bf16[64,64]{1,0:T(8,128)(2,1)}', space=vmem, size = 0x4000, scoped, tag = 'scratch operand']
  #allocation4 [shape = 'f32[32,128]{1,0:T(8,128)}', space=vmem, size = 0x4000, scoped, tag = 'scratch operand']
  %s0 = inlined_call_operand.vmem [shape: f32[8,8,128], index: 0, kind: input, shape index: {}]
  %s1 = inlined_call_operand.vmem [shape: f32[8,16,64], index: 1, kind: input, shape index: {}]
  %s2 = inlined_call_operand.vmem [shape: f32[1,128], index: 2, kind: input, shape index: {}]
  %s3 = inlined_call_operand.vmem [shape: f32[1,128], index: 3, kind: input, shape index: {}]
  %s4 = inlined_call_operand.vmem [shape: f32[1,64], index: 4, kind: input, shape index: {}]
  %s5 = inlined_call_operand.vmem [shape: f32[1,64], index: 5, kind: input, shape index: {}]
  %s6 = inlined_call_operand.vmem [shape: bf16[4,128,32], index: 6, kind: input, shape index: {}]
  %s7 = inlined_call_operand.vmem [shape: f32[4,1,32], index: 7, kind: input, shape index: {}]
  %s8 = inlined_call_operand.vmem [shape: bf16[4,64,32], index: 8, kind: input, shape index: {}]
  %s9 = inlined_call_operand.vmem [shape: f32[4,1,32], index: 9, kind: input, shape index: {}]
  %s10 = inlined_call_operand.vmem [shape: bf16[4,64,32], index: 10, kind: input, shape index: {}]
  %s11 = inlined_call_operand.vmem [shape: f32[4,1,32], index: 11, kind: input, shape index: {}]
  %s12 = inlined_call_operand.vmem [shape: bf16[4,32,128], index: 12, kind: input, shape index: {}]
  %s13 = inlined_call_operand.vmem [shape: f32[1,128], index: 13, kind: input, shape index: {}]
  %s14 = inlined_call_operand.hbm [shape: f32[8,8,128], index: 14, kind: output, shape index: {}]
  %s15 = sld [smem:[#allocation0]]
  $region97: #{tpu_custom_call.1} parent=0
    _
  %s17 = ssub.s32 1, %s15
  %s18 = scalar_select 0, %s17, %s15
  $region1: #{tpu_custom_call.1} parent=0
    #allocation5 [shape = 'u8[32768]{0}', space=vmem, size = 0x8000, scoped, tag = 'output window, operand 0']
    #allocation6 [shape = 's32[2]{0}', space=sflag, size = 0x8, scoped, tag = 'scoped memory for tpu_custom_call.1']
    %19 = vsyncpa [#allocation6], 0
    %s20 = scalar_lea.sflag [#allocation6], 1
    %21 = vsyncpa %s20, 0
    loop: start=0, step=1, limit=10
    $region2: #{tpu_custom_call.1} parent=1 // loop_pre_header
      _
    $region3: #{tpu_custom_call.1} parent=1 // loop_header
      %s23 = sphi 0, %s27
      %p24 = scmp.ge.s32.totalorder %s23, 10
      %s30 = sphi 0, %s42
      %s31 = sphi 0, %s38
      %s32 = sphi 0, %s30
      %s33 = sphi 0, %s31
      %s34 = sphi 0, %s32
      %s35 = sphi 0, %s33
      %s45 = sphi 0, %s47
      %s48 = sphi 0, %s45
      %s49 = sphi 0, %s48
      %s65 = sphi 0, %s49
      %s71 = sphi 0, %s73
      %s74 = sphi 0, %s71
      %s75 = sphi 0, %s74
      %s91 = sphi 0, %s75
      %s95 = sphi 0, %s95
      %s97 = sphi 0, %s95
      %s98 = sphi 0, %s97
      %s112 = sphi 0, %s98
      %s116 = sphi 0, %s116
      %s118 = sphi 0, %s116
      %s119 = sphi 0, %s118
      %s133 = sphi 0, %s119
      %s137 = sphi 0, %s137
      %s139 = sphi 0, %s137
      %s140 = sphi 0, %s139
      %s154 = sphi 0, %s140
      %s158 = sphi 0, %s158
      %s160 = sphi 0, %s158
      %s161 = sphi 0, %s160
      %s175 = sphi 0, %s161
      %s181 = sphi 0, %s183
      %s184 = sphi 0, %s181
      %s185 = sphi 0, %s184
      %s201 = sphi 0, %s185
      %s207 = sphi 0, %s209
      %s210 = sphi 0, %s207
      %s211 = sphi 0, %s210
      %s227 = sphi 0, %s211
      %s233 = sphi 0, %s235
      %s236 = sphi 0, %s233
      %s237 = sphi 0, %s236
      %s253 = sphi 0, %s237
      %s259 = sphi 0, %s261
      %s262 = sphi 0, %s259
      %s263 = sphi 0, %s262
      %s279 = sphi 0, %s263
      %s285 = sphi 0, %s287
      %s288 = sphi 0, %s285
      %s289 = sphi 0, %s288
      %s305 = sphi 0, %s289
      %s311 = sphi 0, %s313
      %s314 = sphi 0, %s311
      %s315 = sphi 0, %s314
      %s331 = sphi 0, %s315
      %s337 = sphi 0, %s339
      %s340 = sphi 0, %s337
      %s341 = sphi 0, %s340
      %s357 = sphi 0, %s341
      %s361 = sphi 0, %s361
      %s363 = sphi 0, %s361
      %s364 = sphi 0, %s363
      %s378 = sphi 0, %s364
      %s384 = sphi 0, %s386
      %s387 = sphi 0, %s384
      %s388 = sphi 0, %s387
      %s404 = sphi 0, %s388
    $region4: #{tpu_custom_call.1} parent=1 // loop_header_branch
      %26 = sbr.rel (%p24) target = $region8
    $region5: #{tpu_custom_call.1} parent=1 // loop_body
      %s28 = ssub.s32 %s23, 1
      %s29 = ssub.s32 %s23, 2
      %s36 = sadd.s32 1, %s31
      %p37 = scmp.ge.s32.totalorder %s36, 4
      %s38 = scalar_select %p37, 0, %s36
      %s39 = sadd.s32 1, %s30
      %s40 = scalar_select %p37, %s39, %s30
      %p41 = scmp.ge.s32.totalorder %s40, 2
      %s42 = scalar_select %p41, 0, %s40
      %s43 = ssub.s32 %s30, %s42
      %p44 = scmp.eq.s32.totalorder %s43, 0
      %s46 = sadd.s32 %s45, 1
      %s47 = scalar_select %p44, %s45, %s46
      %p50 = pneg %p44
      %p51 = scmp.eq.s32.totalorder %s23, 7
      %p52 = por %p50, %p51
      %p53 = scmp.ne.s32.totalorder %s45, %s48
      %p54 = scmp.eq.s32.totalorder %s23, 0
      %p55 = por %p53, %p54
      %p56 = scmp.ne.s32.totalorder %s45, %s48
      %p57 = scmp.eq.s32.totalorder %s28, 7
      %p58 = por %p56, %p57
      %p59 = scmp.ne.s32.totalorder %s48, %s49
      %p60 = scmp.eq.s32.totalorder %s28, 0
      %p61 = por %p59, %p60
      %p62 = scmp.ne.s32.totalorder %s48, %s49
      %p63 = scmp.eq.s32.totalorder %s29, 7
      %p64 = por %p62, %p63
      %p66 = scmp.ne.s32.totalorder %s49, %s65
      %p67 = scmp.eq.s32.totalorder %s29, 0
      %p68 = por %p66, %p67
      %s69 = ssub.s32 %s30, %s42
      %p70 = scmp.eq.s32.totalorder %s69, 0
      %s72 = sadd.s32 %s71, 1
      %s73 = scalar_select %p70, %s71, %s72
      %p76 = pneg %p70
      %p77 = scmp.eq.s32.totalorder %s23, 7
      %p78 = por %p76, %p77
      %p79 = scmp.ne.s32.totalorder %s71, %s74
      %p80 = scmp.eq.s32.totalorder %s23, 0
      %p81 = por %p79, %p80
      %p82 = scmp.ne.s32.totalorder %s71, %s74
      %p83 = scmp.eq.s32.totalorder %s28, 7
      %p84 = por %p82, %p83
      %p85 = scmp.ne.s32.totalorder %s74, %s75
      %p86 = scmp.eq.s32.totalorder %s28, 0
      %p87 = por %p85, %p86
      %p88 = scmp.ne.s32.totalorder %s74, %s75
      %p89 = scmp.eq.s32.totalorder %s29, 7
      %p90 = por %p88, %p89
      %p92 = scmp.ne.s32.totalorder %s75, %s91
      %p93 = scmp.eq.s32.totalorder %s29, 0
      %p94 = por %p92, %p93
      %s96 = sadd.s32 %s95, 1
      %p99 = scmp.eq.s32.totalorder %s23, 7
      %p100 = scmp.ne.s32.totalorder %s95, %s97
      %p101 = scmp.eq.s32.totalorder %s23, 0
      %p102 = por %p100, %p101
      %p103 = scmp.ne.s32.totalorder %s95, %s97
      %p104 = scmp.eq.s32.totalorder %s28, 7
      %p105 = por %p103, %p104
      %p106 = scmp.ne.s32.totalorder %s97, %s98
      %p107 = scmp.eq.s32.totalorder %s28, 0
      %p108 = por %p106, %p107
      %p109 = scmp.ne.s32.totalorder %s97, %s98
      %p110 = scmp.eq.s32.totalorder %s29, 7
      %p111 = por %p109, %p110
      %p113 = scmp.ne.s32.totalorder %s98, %s112
      %p114 = scmp.eq.s32.totalorder %s29, 0
      %p115 = por %p113, %p114
      %s117 = sadd.s32 %s116, 1
      %p120 = scmp.eq.s32.totalorder %s23, 7
      %p121 = scmp.ne.s32.totalorder %s116, %s118
      %p122 = scmp.eq.s32.totalorder %s23, 0
      %p123 = por %p121, %p122
      %p124 = scmp.ne.s32.totalorder %s116, %s118
      %p125 = scmp.eq.s32.totalorder %s28, 7
      %p126 = por %p124, %p125
      %p127 = scmp.ne.s32.totalorder %s118, %s119
      %p128 = scmp.eq.s32.totalorder %s28, 0
      %p129 = por %p127, %p128
      %p130 = scmp.ne.s32.totalorder %s118, %s119
      %p131 = scmp.eq.s32.totalorder %s29, 7
      %p132 = por %p130, %p131
      %p134 = scmp.ne.s32.totalorder %s119, %s133
      %p135 = scmp.eq.s32.totalorder %s29, 0
      %p136 = por %p134, %p135
      %s138 = sadd.s32 %s137, 1
      %p141 = scmp.eq.s32.totalorder %s23, 7
      %p142 = scmp.ne.s32.totalorder %s137, %s139
      %p143 = scmp.eq.s32.totalorder %s23, 0
      %p144 = por %p142, %p143
      %p145 = scmp.ne.s32.totalorder %s137, %s139
      %p146 = scmp.eq.s32.totalorder %s28, 7
      %p147 = por %p145, %p146
      %p148 = scmp.ne.s32.totalorder %s139, %s140
      %p149 = scmp.eq.s32.totalorder %s28, 0
      %p150 = por %p148, %p149
      %p151 = scmp.ne.s32.totalorder %s139, %s140
      %p152 = scmp.eq.s32.totalorder %s29, 7
      %p153 = por %p151, %p152
      %p155 = scmp.ne.s32.totalorder %s140, %s154
      %p156 = scmp.eq.s32.totalorder %s29, 0
      %p157 = por %p155, %p156
      %s159 = sadd.s32 %s158, 1
      %p162 = scmp.eq.s32.totalorder %s23, 7
      %p163 = scmp.ne.s32.totalorder %s158, %s160
      %p164 = scmp.eq.s32.totalorder %s23, 0
      %p165 = por %p163, %p164
      %p166 = scmp.ne.s32.totalorder %s158, %s160
      %p167 = scmp.eq.s32.totalorder %s28, 7
      %p168 = por %p166, %p167
      %p169 = scmp.ne.s32.totalorder %s160, %s161
      %p170 = scmp.eq.s32.totalorder %s28, 0
      %p171 = por %p169, %p170
      %p172 = scmp.ne.s32.totalorder %s160, %s161
      %p173 = scmp.eq.s32.totalorder %s29, 7
      %p174 = por %p172, %p173
      %p176 = scmp.ne.s32.totalorder %s161, %s175
      %p177 = scmp.eq.s32.totalorder %s29, 0
      %p178 = por %p176, %p177
      %s179 = ssub.s32 %s31, %s38
      %p180 = scmp.eq.s32.totalorder %s179, 0
      %s182 = sadd.s32 %s181, 1
      %s183 = scalar_select %p180, %s181, %s182
      %p186 = pneg %p180
      %p187 = scmp.eq.s32.totalorder %s23, 7
      %p188 = por %p186, %p187
      %p189 = scmp.ne.s32.totalorder %s181, %s184
      %p190 = scmp.eq.s32.totalorder %s23, 0
      %p191 = por %p189, %p190
      %p192 = scmp.ne.s32.totalorder %s181, %s184
      %p193 = scmp.eq.s32.totalorder %s28, 7
      %p194 = por %p192, %p193
      %p195 = scmp.ne.s32.totalorder %s184, %s185
      %p196 = scmp.eq.s32.totalorder %s28, 0
      %p197 = por %p195, %p196
      %p198 = scmp.ne.s32.totalorder %s184, %s185
      %p199 = scmp.eq.s32.totalorder %s29, 7
      %p200 = por %p198, %p199
      %p202 = scmp.ne.s32.totalorder %s185, %s201
      %p203 = scmp.eq.s32.totalorder %s29, 0
      %p204 = por %p202, %p203
      %s205 = ssub.s32 %s31, %s38
      %p206 = scmp.eq.s32.totalorder %s205, 0
      %s208 = sadd.s32 %s207, 1
      %s209 = scalar_select %p206, %s207, %s208
      %p212 = pneg %p206
      %p213 = scmp.eq.s32.totalorder %s23, 7
      %p214 = por %p212, %p213
      %p215 = scmp.ne.s32.totalorder %s207, %s210
      %p216 = scmp.eq.s32.totalorder %s23, 0
      %p217 = por %p215, %p216
      %p218 = scmp.ne.s32.totalorder %s207, %s210
      %p219 = scmp.eq.s32.totalorder %s28, 7
      %p220 = por %p218, %p219
      %p221 = scmp.ne.s32.totalorder %s210, %s211
      %p222 = scmp.eq.s32.totalorder %s28, 0
      %p223 = por %p221, %p222
      %p224 = scmp.ne.s32.totalorder %s210, %s211
      %p225 = scmp.eq.s32.totalorder %s29, 7
      %p226 = por %p224, %p225
      %p228 = scmp.ne.s32.totalorder %s211, %s227
      %p229 = scmp.eq.s32.totalorder %s29, 0
      %p230 = por %p228, %p229
      %s231 = ssub.s32 %s31, %s38
      %p232 = scmp.eq.s32.totalorder %s231, 0
      %s234 = sadd.s32 %s233, 1
      %s235 = scalar_select %p232, %s233, %s234
      %p238 = pneg %p232
      %p239 = scmp.eq.s32.totalorder %s23, 7
      %p240 = por %p238, %p239
      %p241 = scmp.ne.s32.totalorder %s233, %s236
      %p242 = scmp.eq.s32.totalorder %s23, 0
      %p243 = por %p241, %p242
      %p244 = scmp.ne.s32.totalorder %s233, %s236
      %p245 = scmp.eq.s32.totalorder %s28, 7
      %p246 = por %p244, %p245
      %p247 = scmp.ne.s32.totalorder %s236, %s237
      %p248 = scmp.eq.s32.totalorder %s28, 0
      %p249 = por %p247, %p248
      %p250 = scmp.ne.s32.totalorder %s236, %s237
      %p251 = scmp.eq.s32.totalorder %s29, 7
      %p252 = por %p250, %p251
      %p254 = scmp.ne.s32.totalorder %s237, %s253
      %p255 = scmp.eq.s32.totalorder %s29, 0
      %p256 = por %p254, %p255
      %s257 = ssub.s32 %s31, %s38
      %p258 = scmp.eq.s32.totalorder %s257, 0
      %s260 = sadd.s32 %s259, 1
      %s261 = scalar_select %p258, %s259, %s260
      %p264 = pneg %p258
      %p265 = scmp.eq.s32.totalorder %s23, 7
      %p266 = por %p264, %p265
      %p267 = scmp.ne.s32.totalorder %s259, %s262
      %p268 = scmp.eq.s32.totalorder %s23, 0
      %p269 = por %p267, %p268
      %p270 = scmp.ne.s32.totalorder %s259, %s262
      %p271 = scmp.eq.s32.totalorder %s28, 7
      %p272 = por %p270, %p271
      %p273 = scmp.ne.s32.totalorder %s262, %s263
      %p274 = scmp.eq.s32.totalorder %s28, 0
      %p275 = por %p273, %p274
      %p276 = scmp.ne.s32.totalorder %s262, %s263
      %p277 = scmp.eq.s32.totalorder %s29, 7
      %p278 = por %p276, %p277
      %p280 = scmp.ne.s32.totalorder %s263, %s279
      %p281 = scmp.eq.s32.totalorder %s29, 0
      %p282 = por %p280, %p281
      %s283 = ssub.s32 %s31, %s38
      %p284 = scmp.eq.s32.totalorder %s283, 0
      %s286 = sadd.s32 %s285, 1
      %s287 = scalar_select %p284, %s285, %s286
      %p290 = pneg %p284
      %p291 = scmp.eq.s32.totalorder %s23, 7
      %p292 = por %p290, %p291
      %p293 = scmp.ne.s32.totalorder %s285, %s288
      %p294 = scmp.eq.s32.totalorder %s23, 0
      %p295 = por %p293, %p294
      %p296 = scmp.ne.s32.totalorder %s285, %s288
      %p297 = scmp.eq.s32.totalorder %s28, 7
      %p298 = por %p296, %p297
      %p299 = scmp.ne.s32.totalorder %s288, %s289
      %p300 = scmp.eq.s32.totalorder %s28, 0
      %p301 = por %p299, %p300
      %p302 = scmp.ne.s32.totalorder %s288, %s289
      %p303 = scmp.eq.s32.totalorder %s29, 7
      %p304 = por %p302, %p303
      %p306 = scmp.ne.s32.totalorder %s289, %s305
      %p307 = scmp.eq.s32.totalorder %s29, 0
      %p308 = por %p306, %p307
      %s309 = ssub.s32 %s31, %s38
      %p310 = scmp.eq.s32.totalorder %s309, 0
      %s312 = sadd.s32 %s311, 1
      %s313 = scalar_select %p310, %s311, %s312
      %p316 = pneg %p310
      %p317 = scmp.eq.s32.totalorder %s23, 7
      %p318 = por %p316, %p317
      %p319 = scmp.ne.s32.totalorder %s311, %s314
      %p320 = scmp.eq.s32.totalorder %s23, 0
      %p321 = por %p319, %p320
      %p322 = scmp.ne.s32.totalorder %s311, %s314
      %p323 = scmp.eq.s32.totalorder %s28, 7
      %p324 = por %p322, %p323
      %p325 = scmp.ne.s32.totalorder %s314, %s315
      %p326 = scmp.eq.s32.totalorder %s28, 0
      %p327 = por %p325, %p326
      %p328 = scmp.ne.s32.totalorder %s314, %s315
      %p329 = scmp.eq.s32.totalorder %s29, 7
      %p330 = por %p328, %p329
      %p332 = scmp.ne.s32.totalorder %s315, %s331
      %p333 = scmp.eq.s32.totalorder %s29, 0
      %p334 = por %p332, %p333
      %s335 = ssub.s32 %s31, %s38
      %p336 = scmp.eq.s32.totalorder %s335, 0
      %s338 = sadd.s32 %s337, 1
      %s339 = scalar_select %p336, %s337, %s338
      %p342 = pneg %p336
      %p343 = scmp.eq.s32.totalorder %s23, 7
      %p344 = por %p342, %p343
      %p345 = scmp.ne.s32.totalorder %s337, %s340
      %p346 = scmp.eq.s32.totalorder %s23, 0
      %p347 = por %p345, %p346
      %p348 = scmp.ne.s32.totalorder %s337, %s340
      %p349 = scmp.eq.s32.totalorder %s28, 7
      %p350 = por %p348, %p349
      %p351 = scmp.ne.s32.totalorder %s340, %s341
      %p352 = scmp.eq.s32.totalorder %s28, 0
      %p353 = por %p351, %p352
      %p354 = scmp.ne.s32.totalorder %s340, %s341
      %p355 = scmp.eq.s32.totalorder %s29, 7
      %p356 = por %p354, %p355
      %p358 = scmp.ne.s32.totalorder %s341, %s357
      %p359 = scmp.eq.s32.totalorder %s29, 0
      %p360 = por %p358, %p359
      %s362 = sadd.s32 %s361, 1
      %p365 = scmp.eq.s32.totalorder %s23, 7
      %p366 = scmp.ne.s32.totalorder %s361, %s363
      %p367 = scmp.eq.s32.totalorder %s23, 0
      %p368 = por %p366, %p367
      %p369 = scmp.ne.s32.totalorder %s361, %s363
      %p370 = scmp.eq.s32.totalorder %s28, 7
      %p371 = por %p369, %p370
      %p372 = scmp.ne.s32.totalorder %s363, %s364
      %p373 = scmp.eq.s32.totalorder %s28, 0
      %p374 = por %p372, %p373
      %p375 = scmp.ne.s32.totalorder %s363, %s364
      %p376 = scmp.eq.s32.totalorder %s29, 7
      %p377 = por %p375, %p376
      %p379 = scmp.ne.s32.totalorder %s364, %s378
      %p380 = scmp.eq.s32.totalorder %s29, 0
      %p381 = por %p379, %p380
      %s382 = ssub.s32 %s30, %s42
      %p383 = scmp.eq.s32.totalorder %s382, 0
      %s385 = sadd.s32 %s384, 1
      %s386 = scalar_select %p383, %s384, %s385
      %p389 = pneg %p383
      %p390 = scmp.eq.s32.totalorder %s23, 7
      %p391 = por %p389, %p390
      %p392 = scmp.ne.s32.totalorder %s384, %s387
      %p393 = scmp.eq.s32.totalorder %s23, 0
      %p394 = por %p392, %p393
      %p395 = scmp.ne.s32.totalorder %s384, %s387
      %p396 = scmp.eq.s32.totalorder %s28, 7
      %p397 = por %p395, %p396
      %p398 = scmp.ne.s32.totalorder %s387, %s388
      %p399 = scmp.eq.s32.totalorder %s28, 0
      %p400 = por %p398, %p399
      %p401 = scmp.ne.s32.totalorder %s387, %s388
      %p402 = scmp.eq.s32.totalorder %s29, 7
      %p403 = por %p401, %p402
      %p405 = scmp.ne.s32.totalorder %s388, %s404
      %p406 = scmp.eq.s32.totalorder %s29, 0
      %p407 = por %p405, %p406
      %p408 = scmp.le.s32.totalorder 1, %s23
      %p409 = scmp.lt.s32.totalorder %s23, 9
      %p410 = pnand %p408, %p409
      %p411 = pneg %p410
      // Predicated region
      $region9: #{tpu_custom_call.1} parent=5 // pred_check
        _
      $region10: #{tpu_custom_call.1} parent=5 // pred_check_branch
        %413 = sbr.rel (%p410) target = $region12
      $region11: #{tpu_custom_call.1} parent=5 // pred_region
        %s414 = ssub.s32 %s23, 1
        // Predicated region
        $region13: #{tpu_custom_call.1} parent=11 // pred_check
          %p415 = pneg %p108
        $region14: #{tpu_custom_call.1} parent=11 // pred_check_branch
          %417 = sbr.rel (%p415) target = $region16
        $region15: #{tpu_custom_call.1} parent=11 // pred_region
          _
        $region16: #{tpu_custom_call.1} parent=11 // pred_fallthru
          _
        // Predicated region
        $region17: #{tpu_custom_call.1} parent=11 // pred_check
          %p418 = pneg %p129
        $region18: #{tpu_custom_call.1} parent=11 // pred_check_branch
          %420 = sbr.rel (%p418) target = $region20
        $region19: #{tpu_custom_call.1} parent=11 // pred_region
          _
        $region20: #{tpu_custom_call.1} parent=11 // pred_fallthru
          _
        // Predicated region
        $region21: #{tpu_custom_call.1} parent=11 // pred_check
          %p421 = pneg %p150
        $region22: #{tpu_custom_call.1} parent=11 // pred_check_branch
          %423 = sbr.rel (%p421) target = $region24
        $region23: #{tpu_custom_call.1} parent=11 // pred_region
          _
        $region24: #{tpu_custom_call.1} parent=11 // pred_fallthru
          _
        // Predicated region
        $region25: #{tpu_custom_call.1} parent=11 // pred_check
          %p424 = pneg %p171
        $region26: #{tpu_custom_call.1} parent=11 // pred_check_branch
          %426 = sbr.rel (%p424) target = $region28
        $region27: #{tpu_custom_call.1} parent=11 // pred_region
          _
        $region28: #{tpu_custom_call.1} parent=11 // pred_fallthru
          _
        // Predicated region
        $region29: #{tpu_custom_call.1} parent=11 // pred_check
          %p427 = pneg %p374
        $region30: #{tpu_custom_call.1} parent=11 // pred_check_branch
          %429 = sbr.rel (%p427) target = $region32
        $region31: #{tpu_custom_call.1} parent=11 // pred_region
          _
        $region32: #{tpu_custom_call.1} parent=11 // pred_fallthru
          _
      $region12: #{tpu_custom_call.1} parent=5 // pred_fallthru
        _
      %p430 = scmp.lt.s32.totalorder %s23, 8
      // Predicated region
      $region33: #{tpu_custom_call.1} parent=5 // pred_check
        %p431 = pneg %p430
      $region34: #{tpu_custom_call.1} parent=5 // pred_check_branch
        %433 = sbr.rel (%p431) target = $region36
      $region35: #{tpu_custom_call.1} parent=5 // pred_region
        // Predicated region
        $region37: #{tpu_custom_call.1} parent=35 // pred_check
          %p434 = pneg %p55
        $region38: #{tpu_custom_call.1} parent=35 // pred_check_branch
          %436 = sbr.rel (%p434) target = $region40
        $region39: #{tpu_custom_call.1} parent=35 // pred_region
          %s437 = smul.u32 4, %s30
          %p438 = scmp.lt.s32.totalorder %s437, 7
          %s439 = scalar_select %p438, %s437, 7
          %s440 = smul.addr %s439, 8
          %s441 = scalar_lea.vmem %s0, %s440
          %s442 = smul.u32 4, %s30
        $region40: #{tpu_custom_call.1} parent=35 // pred_fallthru
          _
        // Predicated region
        $region41: #{tpu_custom_call.1} parent=35 // pred_check
          %p443 = pneg %p81
        $region42: #{tpu_custom_call.1} parent=35 // pred_check_branch
          %445 = sbr.rel (%p443) target = $region44
        $region43: #{tpu_custom_call.1} parent=35 // pred_region
          %s446 = smul.u32 4, %s30
          %p447 = scmp.lt.s32.totalorder %s446, 7
          %s448 = scalar_select %p447, %s446, 7
          %s449 = smul.addr %s448, 2
          %s450 = smul.addr %s449, 8
          %s451 = scalar_lea.vmem %s1, %s450
          %s452 = smul.u32 4, %s30
        $region44: #{tpu_custom_call.1} parent=35 // pred_fallthru
          _
        // Predicated region
        $region45: #{tpu_custom_call.1} parent=35 // pred_check
          %p453 = pneg %p191
        $region46: #{tpu_custom_call.1} parent=35 // pred_check_branch
          %455 = sbr.rel (%p453) target = $region48
        $region47: #{tpu_custom_call.1} parent=35 // pred_region
          %p456 = scmp.lt.s32.totalorder %s31, 3
          %s457 = scalar_select %p456, %s31, 3
          %s458 = smul.addr %s457, 16
          %s459 = smul.addr %s458, 4
          %s460 = scalar_lea.vmem %s6, %s459
        $region48: #{tpu_custom_call.1} parent=35 // pred_fallthru
          _
        // Predicated region
        $region49: #{tpu_custom_call.1} parent=35 // pred_check
          %p461 = pneg %p217
        $region50: #{tpu_custom_call.1} parent=35 // pred_check_branch
          %463 = sbr.rel (%p461) target = $region52
        $region51: #{tpu_custom_call.1} parent=35 // pred_region
          %p464 = scmp.lt.s32.totalorder %s31, 3
          %s465 = scalar_select %p464, %s31, 3
          %s466 = scalar_lea.vmem %s7, %s465
        $region52: #{tpu_custom_call.1} parent=35 // pred_fallthru
          _
        // Predicated region
        $region53: #{tpu_custom_call.1} parent=35 // pred_check
          %p467 = pneg %p243
        $region54: #{tpu_custom_call.1} parent=35 // pred_check_branch
          %469 = sbr.rel (%p467) target = $region56
        $region55: #{tpu_custom_call.1} parent=35 // pred_region
          %p470 = scmp.lt.s32.totalorder %s31, 3
          %s471 = scalar_select %p470, %s31, 3
          %s472 = smul.addr %s471, 8
          %s473 = smul.addr %s472, 4
          %s474 = scalar_lea.vmem %s8, %s473
        $region56: #{tpu_custom_call.1} parent=35 // pred_fallthru
          _
        // Predicated region
        $region57: #{tpu_custom_call.1} parent=35 // pred_check
          %p475 = pneg %p269
        $region58: #{tpu_custom_call.1} parent=35 // pred_check_branch
          %477 = sbr.rel (%p475) target = $region60
        $region59: #{tpu_custom_call.1} parent=35 // pred_region
          %p478 = scmp.lt.s32.totalorder %s31, 3
          %s479 = scalar_select %p478, %s31, 3
          %s480 = scalar_lea.vmem %s9, %s479
        $region60: #{tpu_custom_call.1} parent=35 // pred_fallthru
          _
        // Predicated region
        $region61: #{tpu_custom_call.1} parent=35 // pred_check
          %p481 = pneg %p295
        $region62: #{tpu_custom_call.1} parent=35 // pred_check_branch
          %483 = sbr.rel (%p481) target = $region64
        $region63: #{tpu_custom_call.1} parent=35 // pred_region
          %p484 = scmp.lt.s32.totalorder %s31, 3
          %s485 = scalar_select %p484, %s31, 3
          %s486 = smul.addr %s485, 8
          %s487 = smul.addr %s486, 4
          %s488 = scalar_lea.vmem %s10, %s487
        $region64: #{tpu_custom_call.1} parent=35 // pred_fallthru
          _
        // Predicated region
        $region65: #{tpu_custom_call.1} parent=35 // pred_check
          %p489 = pneg %p321
        $region66: #{tpu_custom_call.1} parent=35 // pred_check_branch
          %491 = sbr.rel (%p489) target = $region68
        $region67: #{tpu_custom_call.1} parent=35 // pred_region
          %p492 = scmp.lt.s32.totalorder %s31, 3
          %s493 = scalar_select %p492, %s31, 3
          %s494 = scalar_lea.vmem %s11, %s493
        $region68: #{tpu_custom_call.1} parent=35 // pred_fallthru
          _
        // Predicated region
        $region69: #{tpu_custom_call.1} parent=35 // pred_check
          %p495 = pneg %p347
        $region70: #{tpu_custom_call.1} parent=35 // pred_check_branch
          %497 = sbr.rel (%p495) target = $region72
        $region71: #{tpu_custom_call.1} parent=35 // pred_region
          %p498 = scmp.lt.s32.totalorder %s31, 3
          %s499 = scalar_select %p498, %s31, 3
          %s500 = smul.addr %s499, 4
          %s501 = smul.addr %s500, 4
          %s502 = scalar_lea.vmem %s12, %s501
        $region72: #{tpu_custom_call.1} parent=35 // pred_fallthru
          _
      $region36: #{tpu_custom_call.1} parent=5 // pred_fallthru
        _
      %p503 = scmp.le.s32.totalorder 1, %s23
      %p504 = scmp.lt.s32.totalorder %s23, 9
      %p505 = pnand %p503, %p504
      %p506 = pneg %p505
      // Predicated region
      $region73: #{tpu_custom_call.1} parent=5 // pred_check
        _
      $region74: #{tpu_custom_call.1} parent=5 // pred_check_branch
        %508 = sbr.rel (%p505) target = $region76
      $region75: #{tpu_custom_call.1} parent=5 // pred_region
        %s509 = ssub.s32 %s23, 1
        %s510 = smul.u32 4, %s32
        %p511 = scmp.lt.s32.totalorder %s510, 7
        %s512 = scalar_select %p511, %s510, 7
        %s513 = smul.addr %s512, 8
        %s514 = scalar_lea.vmem %s0, %s513
        %p515 = pneg %p61
        %p516 = pneg %p58
        %s517 = smul.u32 4, %s32
        %p518 = scmp.lt.s32.totalorder %s517, 7
        %s519 = scalar_select %p518, %s517, 7
        %s520 = smul.addr %s519, 2
        %s521 = smul.addr %s520, 8
        %s522 = scalar_lea.vmem %s1, %s521
        %p523 = pneg %p87
        %p524 = pneg %p84
        %p525 = pneg %p108
        %p526 = pneg %p105
        %p527 = pneg %p129
        %p528 = pneg %p126
        %p529 = pneg %p150
        %p530 = pneg %p147
        %p531 = pneg %p171
        %p532 = pneg %p168
        %p533 = scmp.lt.s32.totalorder %s33, 3
        %s534 = scalar_select %p533, %s33, 3
        %s535 = smul.addr %s534, 16
        %s536 = smul.addr %s535, 4
        %s537 = scalar_lea.vmem %s6, %s536
        %p538 = pneg %p197
        %p539 = pneg %p194
        %p540 = scmp.lt.s32.totalorder %s33, 3
        %s541 = scalar_select %p540, %s33, 3
        %s542 = scalar_lea.vmem %s7, %s541
        %p543 = pneg %p223
        %p544 = pneg %p220
        %p545 = scmp.lt.s32.totalorder %s33, 3
        %s546 = scalar_select %p545, %s33, 3
        %s547 = smul.addr %s546, 8
        %s548 = smul.addr %s547, 4
        %s549 = scalar_lea.vmem %s8, %s548
        %p550 = pneg %p249
        %p551 = pneg %p246
        %p552 = scmp.lt.s32.totalorder %s33, 3
        %s553 = scalar_select %p552, %s33, 3
        %s554 = scalar_lea.vmem %s9, %s553
        %p555 = pneg %p275
        %p556 = pneg %p272
        %p557 = scmp.lt.s32.totalorder %s33, 3
        %s558 = scalar_select %p557, %s33, 3
        %s559 = smul.addr %s558, 8
        %s560 = smul.addr %s559, 4
        %s561 = scalar_lea.vmem %s10, %s560
        %p562 = pneg %p301
        %p563 = pneg %p298
        %p564 = scmp.lt.s32.totalorder %s33, 3
        %s565 = scalar_select %p564, %s33, 3
        %s566 = scalar_lea.vmem %s11, %s565
        %p567 = pneg %p327
        %p568 = pneg %p324
        %p569 = scmp.lt.s32.totalorder %s33, 3
        %s570 = scalar_select %p569, %s33, 3
        %s571 = smul.addr %s570, 4
        %s572 = smul.addr %s571, 4
        %s573 = scalar_lea.vmem %s12, %s572
        %p574 = pneg %p353
        %p575 = pneg %p350
        %p576 = pneg %p374
        %p577 = pneg %p371
        %p578 = pneg %p400
        %p579 = pneg %p397
        %s580 = sand.u32 %s387, 1
        %s581 = scalar_lea.sflag [#allocation6], %s580
        %s582 = sand.u32 %s387, 1
        %s583 = smul.addr %s582, 32
        %s584 = scalar_lea.vmem [#allocation5], %s583
        %s585 = smul.u32 4, %s32
        %p586 = scmp.lt.s32.totalorder %s585, 7
        %s587 = scalar_select %p586, %s585, 7
        %s588 = smul.addr %s587, 8
        %s589 = scalar_lea.vmem %s0, %s588
        %s590 = smul.u32 4, %s32
        %s591 = smul.u32 4, %s32
        %p592 = scmp.lt.s32.totalorder %s591, 7
        %s593 = scalar_select %p592, %s591, 7
        %s594 = smul.addr %s593, 2
        %s595 = smul.addr %s594, 8
        %s596 = scalar_lea.vmem %s1, %s595
        %s597 = smul.u32 4, %s32
        %p598 = scmp.lt.s32.totalorder %s33, 3
        %s599 = scalar_select %p598, %s33, 3
        %s600 = smul.addr %s599, 16
        %s601 = smul.addr %s600, 4
        %s602 = scalar_lea.vmem %s6, %s601
        %p603 = scmp.lt.s32.totalorder %s33, 3
        %s604 = scalar_select %p603, %s33, 3
        %s605 = scalar_lea.vmem %s7, %s604
        %p606 = scmp.lt.s32.totalorder %s33, 3
        %s607 = scalar_select %p606, %s33, 3
        %s608 = smul.addr %s607, 8
        %s609 = smul.addr %s608, 4
        %s610 = scalar_lea.vmem %s8, %s609
        %p611 = scmp.lt.s32.totalorder %s33, 3
        %s612 = scalar_select %p611, %s33, 3
        %s613 = scalar_lea.vmem %s9, %s612
        %p614 = scmp.lt.s32.totalorder %s33, 3
        %s615 = scalar_select %p614, %s33, 3
        %s616 = smul.addr %s615, 8
        %s617 = smul.addr %s616, 4
        %s618 = scalar_lea.vmem %s10, %s617
        %p619 = scmp.lt.s32.totalorder %s33, 3
        %s620 = scalar_select %p619, %s33, 3
        %s621 = scalar_lea.vmem %s11, %s620
        %p622 = scmp.lt.s32.totalorder %s33, 3
        %s623 = scalar_select %p622, %s33, 3
        %s624 = smul.addr %s623, 4
        %s625 = smul.addr %s624, 4
        %s626 = scalar_lea.vmem %s12, %s625
        %s627 = smul.u32 4, %s32
        %p629 = scmp.eq.s32.totalorder %s33, 0
        // Predicated region
        $region77: #{tpu_custom_call.1} parent=75 // pred_check
          %p630 = pneg %p629
        $region78: #{tpu_custom_call.1} parent=75 // pred_check_branch
          %632 = sbr.rel (%p630) target = $region80
        $region79: #{tpu_custom_call.1} parent=75 // pred_region
          %v633 = vld [vmem:[%s589] sm:$0xff]
          %v634 = vld [vmem:[%s589 + $0x8] sm:$0xff]
          %v635 = vld [vmem:[%s589 + $0x10] sm:$0xff]
          %v636 = vld [vmem:[%s589 + $0x18] sm:$0xff]
          %v637 = vld [vmem:[%s596] sm:$0xff]
          %v638 = vld [vmem:[%s596 + $0x8] sm:$0xff]
          %v639 = vld [vmem:[%s596 + $0x10] sm:$0xff]
          %v640 = vld [vmem:[%s596 + $0x18] sm:$0xff]
          %v641 = vld [vmem:[%s596 + $0x20] sm:$0xff]
          %v642 = vld [vmem:[%s596 + $0x28] sm:$0xff]
          %v643 = vld [vmem:[%s596 + $0x30] sm:$0xff]
          %v644 = vld [vmem:[%s596 + $0x38] sm:$0xff]
          %v645 = vld [vmem:[%s2] sm:$0x1]
          %v646 = vld [vmem:[%s3] sm:$0x1]
          %647 = vadd.xlane.f32.xlu0 %v633
          %v648 = vpop.xlane.xlu0 %647
          %649 = vadd.xlane.f32.xlu0 %v634
          %v650 = vpop.xlane.xlu0 %649
          %651 = vadd.xlane.f32.xlu0 %v635
          %v652 = vpop.xlane.xlu0 %651
          %653 = vadd.xlane.f32.xlu0 %v636
          %v654 = vpop.xlane.xlu0 %653
          %v655 = vrcp.pop 128.0
          %v656 = vmul.f32 128.0, %v655
          %v657 = vsub.f32 1.0, %v656
          %v658 = vmul.f32 %v655, %v657
          %v659 = vadd.f32 %v655, %v658
          %vm660 = vweird.f32 %v655
          %v661 = vsel %vm660, %v655, %v659
          %v662 = vmul.f32 %v648, %v661
          %v663 = vmul.f32 %v650, %v661
          %v664 = vmul.f32 %v652, %v661
          %v665 = vmul.f32 %v654, %v661
          %v666 = vsub.f32 %v633, %v662
          %v667 = vsub.f32 %v634, %v663
          %v668 = vsub.f32 %v635, %v664
          %v669 = vsub.f32 %v636, %v665
          %v670 = vmul.f32 %v666, %v666
          %v671 = vmul.f32 %v667, %v667
          %v672 = vmul.f32 %v668, %v668
          %v673 = vmul.f32 %v669, %v669
          %674 = vadd.xlane.f32.xlu0 %v670
          %v675 = vpop.xlane.xlu0 %674
          %676 = vadd.xlane.f32.xlu0 %v671
          %v677 = vpop.xlane.xlu0 %676
          %678 = vadd.xlane.f32.xlu0 %v672
          %v679 = vpop.xlane.xlu0 %678
          %680 = vadd.xlane.f32.xlu0 %v673
          %v681 = vpop.xlane.xlu0 %680
          %v682 = vmul.f32 %v675, %v661
          %v683 = vmul.f32 %v677, %v661
          %v684 = vmul.f32 %v679, %v661
          %v685 = vmul.f32 %v681, %v661
          %v686 = vadd.f32 %v682, 1e-05
          %v687 = vadd.f32 %v683, 1e-05
          %v688 = vadd.f32 %v684, 1e-05
          %v689 = vadd.f32 %v685, 1e-05
          %v690 = vrsqrt.pop %v686
          %v691 = vmul.f32 %v690, %v686
          %v692 = vmul.f32 %v691, %v690
          %v693 = vmul.f32 0.5, %v692
          %v694 = vsub.f32 1.5, %v693
          %v695 = vmul.f32 %v690, %v694
          %vm696 = vweird.f32 %v686
          %vm697 = vweird.f32 %v690
          %vm698 = vmor %vm696, %vm697
          %v699 = vsel %vm698, %v690, %v695
          %v700 = vrsqrt.pop %v687
          %v701 = vmul.f32 %v700, %v687
          %v702 = vmul.f32 %v701, %v700
          %v703 = vmul.f32 0.5, %v702
          %v704 = vsub.f32 1.5, %v703
          %v705 = vmul.f32 %v700, %v704
          %vm706 = vweird.f32 %v687
          %vm707 = vweird.f32 %v700
          %vm708 = vmor %vm706, %vm707
          %v709 = vsel %vm708, %v700, %v705
          %v710 = vrsqrt.pop %v688
          %v711 = vmul.f32 %v710, %v688
          %v712 = vmul.f32 %v711, %v710
          %v713 = vmul.f32 0.5, %v712
          %v714 = vsub.f32 1.5, %v713
          %v715 = vmul.f32 %v710, %v714
          %vm716 = vweird.f32 %v688
          %vm717 = vweird.f32 %v710
          %vm718 = vmor %vm716, %vm717
          %v719 = vsel %vm718, %v710, %v715
          %v720 = vrsqrt.pop %v689
          %v721 = vmul.f32 %v720, %v689
          %v722 = vmul.f32 %v721, %v720
          %v723 = vmul.f32 0.5, %v722
          %v724 = vsub.f32 1.5, %v723
          %v725 = vmul.f32 %v720, %v724
          %vm726 = vweird.f32 %v689
          %vm727 = vweird.f32 %v720
          %vm728 = vmor %vm726, %vm727
          %v729 = vsel %vm728, %v720, %v725
          %v730 = vmul.f32 %v666, %v699
          %v731 = vmul.f32 %v667, %v709
          %v732 = vmul.f32 %v668, %v719
          %v733 = vmul.f32 %v669, %v729
          %v735 = vperm.slane %v645, 0
          %v737 = vmul.f32 %v730, %v735
          %v738 = vmul.f32 %v731, %v735
          %v739 = vmul.f32 %v732, %v735
          %v740 = vmul.f32 %v733, %v735
          %v742 = vperm.slane %v646, 0
          %v744 = vadd.f32 %v737, %v742
          %v745 = vadd.f32 %v738, %v742
          %v746 = vadd.f32 %v739, %v742
          %v747 = vadd.f32 %v740, %v742
          %v748 = vpack.c.bf16 %v744, %v744
          %v749 = vpack.c.bf16 %v745, %v745
          %v750 = vpack.c.bf16 %v746, %v746
          %v751 = vpack.c.bf16 %v747, %v747
          %752 = vst [vmem:[#allocation2] sm:$0xf] %v748
          %753 = vst [vmem:[#allocation2 + $0x4] sm:$0xf] %v749
          %754 = vst [vmem:[#allocation2 + $0x8] sm:$0xf] %v750
          %755 = vst [vmem:[#allocation2 + $0xc] sm:$0xf] %v751
          %v756 = vld [vmem:[%s4] sm:$0x1]
          %v757 = vld [vmem:[%s5] sm:$0x1]
          %vm758 = vcmask 523264
          %v759 = vsel %vm758, %v637, 0.0
          %760 = vadd.xlane.f32.xlu0 %v759
          %v761 = vpop.xlane.xlu0 %760
          %v762 = vsel %vm758, %v638, 0.0
          %763 = vadd.xlane.f32.xlu0 %v762
          %v764 = vpop.xlane.xlu0 %763
          %v765 = vsel %vm758, %v639, 0.0
          %766 = vadd.xlane.f32.xlu0 %v765
          %v767 = vpop.xlane.xlu0 %766
          %v768 = vsel %vm758, %v640, 0.0
          %769 = vadd.xlane.f32.xlu0 %v768
          %v770 = vpop.xlane.xlu0 %769
          %v771 = vsel %vm758, %v641, 0.0
          %772 = vadd.xlane.f32.xlu0 %v771
          %v773 = vpop.xlane.xlu0 %772
          %v774 = vsel %vm758, %v642, 0.0
          %775 = vadd.xlane.f32.xlu0 %v774
          %v776 = vpop.xlane.xlu0 %775
          %v777 = vsel %vm758, %v643, 0.0
          %778 = vadd.xlane.f32.xlu0 %v777
          %v779 = vpop.xlane.xlu0 %778
          %v780 = vsel %vm758, %v644, 0.0
          %781 = vadd.xlane.f32.xlu0 %v780
          %v782 = vpop.xlane.xlu0 %781
          %v783 = vrcp.pop 64.0
          %v784 = vmul.f32 64.0, %v783
          %v785 = vsub.f32 1.0, %v784
          %v786 = vmul.f32 %v783, %v785
          %v787 = vadd.f32 %v783, %v786
          %vm788 = vweird.f32 %v783
          %v789 = vsel %vm788, %v783, %v787
          %v790 = vmul.f32 %v761, %v789
          %v791 = vmul.f32 %v764, %v789
          %v792 = vmul.f32 %v767, %v789
          %v793 = vmul.f32 %v770, %v789
          %v794 = vmul.f32 %v773, %v789
          %v795 = vmul.f32 %v776, %v789
          %v796 = vmul.f32 %v779, %v789
          %v797 = vmul.f32 %v782, %v789
          %v798 = vsub.f32 %v637, %v790
          %v799 = vsub.f32 %v638, %v791
          %v800 = vsub.f32 %v639, %v792
          %v801 = vsub.f32 %v640, %v793
          %v802 = vsub.f32 %v641, %v794
          %v803 = vsub.f32 %v642, %v795
          %v804 = vsub.f32 %v643, %v796
          %v805 = vsub.f32 %v644, %v797
          %v806 = vmul.f32 %v798, %v798
          %v807 = vmul.f32 %v799, %v799
          %v808 = vmul.f32 %v800, %v800
          %v809 = vmul.f32 %v801, %v801
          %v810 = vmul.f32 %v802, %v802
          %v811 = vmul.f32 %v803, %v803
          %v812 = vmul.f32 %v804, %v804
          %v813 = vmul.f32 %v805, %v805
          %v814 = vsel %vm758, %v806, 0.0
          %815 = vadd.xlane.f32.xlu0 %v814
          %v816 = vpop.xlane.xlu0 %815
          %v817 = vsel %vm758, %v807, 0.0
          %818 = vadd.xlane.f32.xlu0 %v817
          %v819 = vpop.xlane.xlu0 %818
          %v820 = vsel %vm758, %v808, 0.0
          %821 = vadd.xlane.f32.xlu0 %v820
          %v822 = vpop.xlane.xlu0 %821
          %v823 = vsel %vm758, %v809, 0.0
          %824 = vadd.xlane.f32.xlu0 %v823
          %v825 = vpop.xlane.xlu0 %824
          %v826 = vsel %vm758, %v810, 0.0
          %827 = vadd.xlane.f32.xlu0 %v826
          %v828 = vpop.xlane.xlu0 %827
          %v829 = vsel %vm758, %v811, 0.0
          %830 = vadd.xlane.f32.xlu0 %v829
          %v831 = vpop.xlane.xlu0 %830
          %v832 = vsel %vm758, %v812, 0.0
          %833 = vadd.xlane.f32.xlu0 %v832
          %v834 = vpop.xlane.xlu0 %833
          %v835 = vsel %vm758, %v813, 0.0
          %836 = vadd.xlane.f32.xlu0 %v835
          %v837 = vpop.xlane.xlu0 %836
          %v838 = vmul.f32 %v816, %v789
          %v839 = vmul.f32 %v819, %v789
          %v840 = vmul.f32 %v822, %v789
          %v841 = vmul.f32 %v825, %v789
          %v842 = vmul.f32 %v828, %v789
          %v843 = vmul.f32 %v831, %v789
          %v844 = vmul.f32 %v834, %v789
          %v845 = vmul.f32 %v837, %v789
          %v846 = vadd.f32 %v838, 1e-05
          %v847 = vadd.f32 %v839, 1e-05
          %v848 = vadd.f32 %v840, 1e-05
          %v849 = vadd.f32 %v841, 1e-05
          %v850 = vadd.f32 %v842, 1e-05
          %v851 = vadd.f32 %v843, 1e-05
          %v852 = vadd.f32 %v844, 1e-05
          %v853 = vadd.f32 %v845, 1e-05
          %v854 = vrsqrt.pop %v846
          %v855 = vmul.f32 %v854, %v846
          %v856 = vmul.f32 %v855, %v854
          %v857 = vmul.f32 0.5, %v856
          %v858 = vsub.f32 1.5, %v857
          %v859 = vmul.f32 %v854, %v858
          %vm860 = vweird.f32 %v846
          %vm861 = vweird.f32 %v854
          %vm862 = vmor %vm860, %vm861
          %v863 = vsel %vm862, %v854, %v859
          %v864 = vrsqrt.pop %v847
          %v865 = vmul.f32 %v864, %v847
          %v866 = vmul.f32 %v865, %v864
          %v867 = vmul.f32 0.5, %v866
          %v868 = vsub.f32 1.5, %v867
          %v869 = vmul.f32 %v864, %v868
          %vm870 = vweird.f32 %v847
          %vm871 = vweird.f32 %v864
          %vm872 = vmor %vm870, %vm871
          %v873 = vsel %vm872, %v864, %v869
          %v874 = vrsqrt.pop %v848
          %v875 = vmul.f32 %v874, %v848
          %v876 = vmul.f32 %v875, %v874
          %v877 = vmul.f32 0.5, %v876
          %v878 = vsub.f32 1.5, %v877
          %v879 = vmul.f32 %v874, %v878
          %vm880 = vweird.f32 %v848
          %vm881 = vweird.f32 %v874
          %vm882 = vmor %vm880, %vm881
          %v883 = vsel %vm882, %v874, %v879
          %v884 = vrsqrt.pop %v849
          %v885 = vmul.f32 %v884, %v849
          %v886 = vmul.f32 %v885, %v884
          %v887 = vmul.f32 0.5, %v886
          %v888 = vsub.f32 1.5, %v887
          %v889 = vmul.f32 %v884, %v888
          %vm890 = vweird.f32 %v849
          %vm891 = vweird.f32 %v884
          %vm892 = vmor %vm890, %vm891
          %v893 = vsel %vm892, %v884, %v889
          %v894 = vrsqrt.pop %v850
          %v895 = vmul.f32 %v894, %v850
          %v896 = vmul.f32 %v895, %v894
          %v897 = vmul.f32 0.5, %v896
          %v898 = vsub.f32 1.5, %v897
          %v899 = vmul.f32 %v894, %v898
          %vm900 = vweird.f32 %v850
          %vm901 = vweird.f32 %v894
          %vm902 = vmor %vm900, %vm901
          %v903 = vsel %vm902, %v894, %v899
          %v904 = vrsqrt.pop %v851
          %v905 = vmul.f32 %v904, %v851
          %v906 = vmul.f32 %v905, %v904
          %v907 = vmul.f32 0.5, %v906
          %v908 = vsub.f32 1.5, %v907
          %v909 = vmul.f32 %v904, %v908
          %vm910 = vweird.f32 %v851
          %vm911 = vweird.f32 %v904
          %vm912 = vmor %vm910, %vm911
          %v913 = vsel %vm912, %v904, %v909
          %v914 = vrsqrt.pop %v852
          %v915 = vmul.f32 %v914, %v852
          %v916 = vmul.f32 %v915, %v914
          %v917 = vmul.f32 0.5, %v916
          %v918 = vsub.f32 1.5, %v917
          %v919 = vmul.f32 %v914, %v918
          %vm920 = vweird.f32 %v852
          %vm921 = vweird.f32 %v914
          %vm922 = vmor %vm920, %vm921
          %v923 = vsel %vm922, %v914, %v919
          %v924 = vrsqrt.pop %v853
          %v925 = vmul.f32 %v924, %v853
          %v926 = vmul.f32 %v925, %v924
          %v927 = vmul.f32 0.5, %v926
          %v928 = vsub.f32 1.5, %v927
          %v929 = vmul.f32 %v924, %v928
          %vm930 = vweird.f32 %v853
          %vm931 = vweird.f32 %v924
          %vm932 = vmor %vm930, %vm931
          %v933 = vsel %vm932, %v924, %v929
          %v934 = vmul.f32 %v798, %v863
          %v935 = vmul.f32 %v799, %v873
          %v936 = vmul.f32 %v800, %v883
          %v937 = vmul.f32 %v801, %v893
          %v938 = vmul.f32 %v802, %v903
          %v939 = vmul.f32 %v803, %v913
          %v940 = vmul.f32 %v804, %v923
          %v941 = vmul.f32 %v805, %v933
          %v943 = vperm.slane %v756, 0
          %v945 = vmul.f32 %v934, %v943
          %v946 = vmul.f32 %v935, %v943
          %v947 = vmul.f32 %v936, %v943
          %v948 = vmul.f32 %v937, %v943
          %v949 = vmul.f32 %v938, %v943
          %v950 = vmul.f32 %v939, %v943
          %v951 = vmul.f32 %v940, %v943
          %v952 = vmul.f32 %v941, %v943
          %v954 = vperm.slane %v757, 0
          %v956 = vadd.f32 %v945, %v954
          %v957 = vadd.f32 %v946, %v954
          %v958 = vadd.f32 %v947, %v954
          %v959 = vadd.f32 %v948, %v954
          %v960 = vadd.f32 %v949, %v954
          %v961 = vadd.f32 %v950, %v954
          %v962 = vadd.f32 %v951, %v954
          %v963 = vadd.f32 %v952, %v954
          %v964 = vpack.c.bf16 %v956, %v956
          %v965 = vpack.c.bf16 %v957, %v957
          %v966 = vpack.c.bf16 %v958, %v958
          %v967 = vpack.c.bf16 %v959, %v959
          %v968 = vpack.c.bf16 %v960, %v960
          %v969 = vpack.c.bf16 %v961, %v961
          %v970 = vpack.c.bf16 %v962, %v962
          %v971 = vpack.c.bf16 %v963, %v963
          %vm972 = vcmask 519168
          %973 = vst.msk [vmem:[#allocation3] sm:$0xf] %vm972, %v964
          %974 = vst.msk [vmem:[#allocation3 + $0x4] sm:$0xf] %vm972, %v965
          %975 = vst.msk [vmem:[#allocation3 + $0x8] sm:$0xf] %vm972, %v966
          %976 = vst.msk [vmem:[#allocation3 + $0xc] sm:$0xf] %vm972, %v967
          %977 = vst.msk [vmem:[#allocation3 + $0x10] sm:$0xf] %vm972, %v968
          %978 = vst.msk [vmem:[#allocation3 + $0x14] sm:$0xf] %vm972, %v969
          %979 = vst.msk [vmem:[#allocation3 + $0x18] sm:$0xf] %vm972, %v970
          %980 = vst.msk [vmem:[#allocation3 + $0x1c] sm:$0xf] %vm972, %v971
          %981 = vst [vmem:[#allocation4] sm:$0xff] 0.0
          %982 = vst [vmem:[#allocation4 + $0x8] sm:$0xff] 0.0
          %983 = vst [vmem:[#allocation4 + $0x10] sm:$0xff] 0.0
          %984 = vst [vmem:[#allocation4 + $0x18] sm:$0xff] 0.0
        $region80: #{tpu_custom_call.1} parent=75 // pred_fallthru
          _
        %v985 = vld [vmem:[#allocation2] sm:$0xf]
        %v986 = vld [vmem:[#allocation2 + $0x4] sm:$0xf]
        %v987 = vld [vmem:[#allocation2 + $0x8] sm:$0xf]
        %v988 = vld [vmem:[#allocation2 + $0xc] sm:$0xf]
        %v989 = vld [vmem:[%s602] sm:$0xf]
        %v990 = vld [vmem:[%s602 + $0x4] sm:$0xf]
        %v991 = vld [vmem:[%s602 + $0x8] sm:$0xf]
        %v992 = vld [vmem:[%s602 + $0xc] sm:$0xf]
        %v993 = vld [vmem:[%s602 + $0x10] sm:$0xf]
        %v994 = vld [vmem:[%s602 + $0x14] sm:$0xf]
        %v995 = vld [vmem:[%s602 + $0x18] sm:$0xf]
        %v996 = vld [vmem:[%s602 + $0x1c] sm:$0xf]
        %v997 = vld [vmem:[%s602 + $0x20] sm:$0xf]
        %v998 = vld [vmem:[%s602 + $0x24] sm:$0xf]
        %v999 = vld [vmem:[%s602 + $0x28] sm:$0xf]
        %v1000 = vld [vmem:[%s602 + $0x2c] sm:$0xf]
        %v1001 = vld [vmem:[%s602 + $0x30] sm:$0xf]
        %v1002 = vld [vmem:[%s602 + $0x34] sm:$0xf]
        %v1003 = vld [vmem:[%s602 + $0x38] sm:$0xf]
        %v1004 = vld [vmem:[%s602 + $0x3c] sm:$0xf]
        %v1005 = vld [vmem:[%s605] sm:$0x1]
        %v1007 = vperm.slane %v1005, 0
        %v1013 = vunpack.c.l.b16 %v985
        %v1014 = vunpack.c.l.b16 %v986
        %v1015 = vunpack.c.l.b16 %v987
        %v1016 = vunpack.c.l.b16 %v988
        %v1017 = vpack.c.b16 %v1014, %v1013
        %v1018 = vpack.c.b16 %v1016, %v1015
        %v1037 = vunpack.c.l.b16 %v989
        %v1038 = vunpack.c.l.b16 %v990
        %v1039 = vunpack.c.l.b16 %v991
        %v1040 = vunpack.c.l.b16 %v992
        %v1041 = vunpack.c.l.b16 %v993
        %v1042 = vunpack.c.l.b16 %v994
        %v1043 = vunpack.c.l.b16 %v995
        %v1044 = vunpack.c.l.b16 %v996
        %v1045 = vunpack.c.l.b16 %v997
        %v1046 = vunpack.c.l.b16 %v998
        %v1047 = vunpack.c.l.b16 %v999
        %v1048 = vunpack.c.l.b16 %v1000
        %v1049 = vunpack.c.l.b16 %v1001
        %v1050 = vunpack.c.l.b16 %v1002
        %v1051 = vunpack.c.l.b16 %v1003
        %v1052 = vunpack.c.l.b16 %v1004
        %v1053 = vpack.c.b16 %v1038, %v1037
        %v1054 = vpack.c.b16 %v1040, %v1039
        %v1055 = vpack.c.b16 %v1042, %v1041
        %v1056 = vpack.c.b16 %v1044, %v1043
        %v1057 = vpack.c.b16 %v1046, %v1045
        %v1058 = vpack.c.b16 %v1048, %v1047
        %v1059 = vpack.c.b16 %v1050, %v1049
        %v1060 = vpack.c.b16 %v1052, %v1051
        %1069 = vmatpush.bf16.msra.mxu0 %v1060
        %1070 = vmatpush.bf16.msra.mxu0 %v1059
        %1071 = vmatpush.bf16.msra.mxu0 %v1058
        %1072 = vmatpush.bf16.msra.mxu0 %v1057
        %1073 = vmatpush.bf16.msra.mxu0 %v1056
        %1074 = vmatpush.bf16.msra.mxu0 %v1055
        %1075 = vmatpush.bf16.msra.mxu0 %v1054
        %1076 = vmatpush.bf16.msra.mxu0 %v1053
        %1077 = vmatmul.bf16.gmra.mxu0 %v1017
        %v1078 = vpop.f32.mrf.mxu0
        %v1079 = vadd.f32 %v1007, %v1078
        %v1080 = vpop.f32.mrf.mxu0
        %v1081 = vadd.f32 %v1007, %v1080
        %1082 = vmatmul.bf16.gmra.mxu0 %v1018
        %v1083 = vpop.f32.mrf.mxu0
        %v1084 = vadd.f32 %v1007, %v1083
        %v1085 = vpop.f32.mrf.mxu0
        %v1086 = vadd.f32 %v1007, %v1085
        %1087 = vdwg.mxu0
        %v1088 = vld [vmem:[#allocation3] sm:$0xf]
        %v1089 = vld [vmem:[#allocation3 + $0x4] sm:$0xf]
        %v1090 = vld [vmem:[#allocation3 + $0x8] sm:$0xf]
        %v1091 = vld [vmem:[#allocation3 + $0xc] sm:$0xf]
        %v1092 = vld [vmem:[#allocation3 + $0x10] sm:$0xf]
        %v1093 = vld [vmem:[#allocation3 + $0x14] sm:$0xf]
        %v1094 = vld [vmem:[#allocation3 + $0x18] sm:$0xf]
        %v1095 = vld [vmem:[#allocation3 + $0x1c] sm:$0xf]
        %v1096 = vld [vmem:[%s610] sm:$0xf]
        %v1097 = vld [vmem:[%s610 + $0x4] sm:$0xf]
        %v1098 = vld [vmem:[%s610 + $0x8] sm:$0xf]
        %v1099 = vld [vmem:[%s610 + $0xc] sm:$0xf]
        %v1100 = vld [vmem:[%s610 + $0x10] sm:$0xf]
        %v1101 = vld [vmem:[%s610 + $0x14] sm:$0xf]
        %v1102 = vld [vmem:[%s610 + $0x18] sm:$0xf]
        %v1103 = vld [vmem:[%s610 + $0x1c] sm:$0xf]
        %v1104 = vld [vmem:[%s613] sm:$0x1]
        %v1106 = vperm.slane %v1104, 0
        %v1116 = vunpack.c.l.b16 %v1088
        %v1117 = vunpack.c.l.b16 %v1089
        %v1118 = vunpack.c.l.b16 %v1090
        %v1119 = vunpack.c.l.b16 %v1091
        %v1120 = vunpack.c.l.b16 %v1092
        %v1121 = vunpack.c.l.b16 %v1093
        %v1122 = vunpack.c.l.b16 %v1094
        %v1123 = vunpack.c.l.b16 %v1095
        %v1124 = vpack.c.b16 %v1117, %v1116
        %v1125 = vpack.c.b16 %v1119, %v1118
        %v1126 = vpack.c.b16 %v1121, %v1120
        %v1127 = vpack.c.b16 %v1123, %v1122
        %v1136 = vunpack.c.l.b16 %v1096
        %v1137 = vunpack.c.l.b16 %v1097
        %v1138 = vunpack.c.l.b16 %v1098
        %v1139 = vunpack.c.l.b16 %v1099
        %v1140 = vunpack.c.l.b16 %v1100
        %v1141 = vunpack.c.l.b16 %v1101
        %v1142 = vunpack.c.l.b16 %v1102
        %v1143 = vunpack.c.l.b16 %v1103
        %v1144 = vpack.c.b16 %v1137, %v1136
        %v1145 = vpack.c.b16 %v1139, %v1138
        %v1146 = vpack.c.b16 %v1141, %v1140
        %v1147 = vpack.c.b16 %v1143, %v1142
        %vm1152 = vcmask 523264
        %v1154 = vsel %vm1152, %v1124, 0
        %v1157 = vsel %vm1152, %v1125, 0
        %v1160 = vsel %vm1152, %v1126, 0
        %v1163 = vsel %vm1152, %v1127, 0
        %1165 = vmatpush.bf16.msra.mxu0 0
        %1166 = vmatpush.bf16.msra.mxu0 0
        %1167 = vmatpush.bf16.msra.mxu0 0
        %1168 = vmatpush.bf16.msra.mxu0 0
        %1169 = vmatpush.bf16.msra.mxu0 %v1147
        %1170 = vmatpush.bf16.msra.mxu0 %v1146
        %1171 = vmatpush.bf16.msra.mxu0 %v1145
        %1172 = vmatpush.bf16.msra.mxu0 %v1144
        %1173 = vmatmul.bf16.gmra.mxu0 %v1154
        %v1174 = vpop.f32.mrf.mxu0
        %v1175 = vadd.f32 %v1106, %v1174
        %v1176 = vpop.f32.mrf.mxu0
        %v1177 = vadd.f32 %v1106, %v1176
        %1178 = vmatmul.bf16.gmra.mxu0 %v1157
        %v1179 = vpop.f32.mrf.mxu0
        %v1180 = vadd.f32 %v1106, %v1179
        %v1181 = vpop.f32.mrf.mxu0
        %v1182 = vadd.f32 %v1106, %v1181
        %1183 = vmatmul.bf16.gmra.mxu0 %v1160
        %v1184 = vpop.f32.mrf.mxu0
        %v1185 = vadd.f32 %v1106, %v1184
        %v1186 = vpop.f32.mrf.mxu0
        %v1187 = vadd.f32 %v1106, %v1186
        %1188 = vmatmul.bf16.gmra.mxu0 %v1163
        %v1189 = vpop.f32.mrf.mxu0
        %v1190 = vadd.f32 %v1106, %v1189
        %v1191 = vpop.f32.mrf.mxu0
        %v1192 = vadd.f32 %v1106, %v1191
        %1193 = vdwg.mxu0
        %v1194 = vld [vmem:[%s618] sm:$0xf]
        %v1195 = vld [vmem:[%s618 + $0x4] sm:$0xf]
        %v1196 = vld [vmem:[%s618 + $0x8] sm:$0xf]
        %v1197 = vld [vmem:[%s618 + $0xc] sm:$0xf]
        %v1198 = vld [vmem:[%s618 + $0x10] sm:$0xf]
        %v1199 = vld [vmem:[%s618 + $0x14] sm:$0xf]
        %v1200 = vld [vmem:[%s618 + $0x18] sm:$0xf]
        %v1201 = vld [vmem:[%s618 + $0x1c] sm:$0xf]
        %v1202 = vld [vmem:[%s621] sm:$0x1]
        %v1204 = vperm.slane %v1202, 0
        %v1214 = vunpack.c.l.b16 %v1194
        %v1215 = vunpack.c.l.b16 %v1195
        %v1216 = vunpack.c.l.b16 %v1196
        %v1217 = vunpack.c.l.b16 %v1197
        %v1218 = vunpack.c.l.b16 %v1198
        %v1219 = vunpack.c.l.b16 %v1199
        %v1220 = vunpack.c.l.b16 %v1200
        %v1221 = vunpack.c.l.b16 %v1201
        %v1222 = vpack.c.b16 %v1215, %v1214
        %v1223 = vpack.c.b16 %v1217, %v1216
        %v1224 = vpack.c.b16 %v1219, %v1218
        %v1225 = vpack.c.b16 %v1221, %v1220
        %1230 = vmatpush.bf16.msra.mxu0 0
        %1231 = vmatpush.bf16.msra.mxu0 0
        %1232 = vmatpush.bf16.msra.mxu0 0
        %1233 = vmatpush.bf16.msra.mxu0 0
        %1234 = vmatpush.bf16.msra.mxu0 %v1225
        %1235 = vmatpush.bf16.msra.mxu0 %v1224
        %1236 = vmatpush.bf16.msra.mxu0 %v1223
        %1237 = vmatpush.bf16.msra.mxu0 %v1222
        %1238 = vmatmul.bf16.gmra.mxu0 %v1154
        %v1239 = vpop.f32.mrf.mxu0
        %v1240 = vadd.f32 %v1204, %v1239
        %v1241 = vpop.f32.mrf.mxu0
        %v1242 = vadd.f32 %v1204, %v1241
        %1243 = vmatmul.bf16.gmra.mxu0 %v1157
        %v1244 = vpop.f32.mrf.mxu0
        %v1245 = vadd.f32 %v1204, %v1244
        %v1246 = vpop.f32.mrf.mxu0
        %v1247 = vadd.f32 %v1204, %v1246
        %1248 = vmatmul.bf16.gmra.mxu0 %v1160
        %v1249 = vpop.f32.mrf.mxu0
        %v1250 = vadd.f32 %v1204, %v1249
        %v1251 = vpop.f32.mrf.mxu0
        %v1252 = vadd.f32 %v1204, %v1251
        %1253 = vmatmul.bf16.gmra.mxu0 %v1163
        %v1254 = vpop.f32.mrf.mxu0
        %v1255 = vadd.f32 %v1204, %v1254
        %v1256 = vpop.f32.mrf.mxu0
        %v1257 = vadd.f32 %v1204, %v1256
        %1258 = vdwg.mxu0
        %v1259 = vmul.f32 %v1079, 0.17677669
        %v1260 = vmul.f32 %v1081, 0.17677669
        %v1261 = vmul.f32 %v1084, 0.17677669
        %v1262 = vmul.f32 %v1086, 0.17677669
        %v1263 = vpack.c.bf16 %v1259, %v1259
        %v1264 = vpack.c.bf16 %v1260, %v1260
        %v1265 = vpack.c.bf16 %v1261, %v1261
        %v1266 = vpack.c.bf16 %v1262, %v1262
        %v1267 = vpack.c.bf16 %v1175, %v1175
        %v1268 = vpack.c.bf16 %v1177, %v1177
        %v1269 = vpack.c.bf16 %v1180, %v1180
        %v1270 = vpack.c.bf16 %v1182, %v1182
        %v1271 = vpack.c.bf16 %v1185, %v1185
        %v1272 = vpack.c.bf16 %v1187, %v1187
        %v1273 = vpack.c.bf16 %v1190, %v1190
        %v1274 = vpack.c.bf16 %v1192, %v1192
        %v1275 = vpack.c.bf16 %v1240, %v1240
        %v1276 = vpack.c.bf16 %v1242, %v1242
        %v1277 = vpack.c.bf16 %v1245, %v1245
        %v1278 = vpack.c.bf16 %v1247, %v1247
        %v1279 = vpack.c.bf16 %v1250, %v1250
        %v1280 = vpack.c.bf16 %v1252, %v1252
        %v1281 = vpack.c.bf16 %v1255, %v1255
        %v1282 = vpack.c.bf16 %v1257, %v1257
        %v1285 = vunpack.c.l.b16 %v1267
        %v1286 = vunpack.c.l.b16 %v1268
        %v1287 = vpack.c.b16 %v1286, %v1285
        %vm1288 = vcmask 261120
        %v1290 = vsel %vm1288, %v1263, 0
        %v1293 = vsel %vm1288, %v1287, 0
        %1295 = vmatpush.bf16.xpose.msra.mxu0 0
        %1296 = vmatpush.bf16.xpose.msra.mxu0 0
        %1297 = vmatpush.bf16.xpose.msra.mxu0 0
        %1298 = vmatpush.bf16.xpose.msra.mxu0 0
        %1299 = vmatpush.bf16.xpose.msra.mxu0 0
        %1300 = vmatpush.bf16.xpose.msra.mxu0 0
        %1301 = vmatpush.bf16.xpose.msra.mxu0 0
        %1302 = vmatpush.bf16.xpose.msra.mxu0 %v1293
        %1303 = vmatmul.bf16.gmra.mxu0 %v1290
        %v1304 = vpop.f32.mrf.mxu0
        %v1305 = vadd.f32 0.0, %v1304
        %v1306 = vpop.f32.mrf.mxu0
        %1307 = vdwg.mxu0
        %v1310 = vunpack.c.l.b16 %v1269
        %v1311 = vunpack.c.l.b16 %v1270
        %v1312 = vpack.c.b16 %v1311, %v1310
        %v1314 = vsel %vm1288, %v1264, 0
        %v1317 = vsel %vm1288, %v1312, 0
        %1319 = vmatpush.bf16.xpose.msra.mxu0 0
        %1320 = vmatpush.bf16.xpose.msra.mxu0 0
        %1321 = vmatpush.bf16.xpose.msra.mxu0 0
        %1322 = vmatpush.bf16.xpose.msra.mxu0 0
        %1323 = vmatpush.bf16.xpose.msra.mxu0 0
        %1324 = vmatpush.bf16.xpose.msra.mxu0 0
        %1325 = vmatpush.bf16.xpose.msra.mxu0 0
        %1326 = vmatpush.bf16.xpose.msra.mxu0 %v1317
        %1327 = vmatmul.bf16.gmra.mxu0 %v1314
        %v1328 = vpop.f32.mrf.mxu0
        %v1329 = vadd.f32 0.0, %v1328
        %v1330 = vpop.f32.mrf.mxu0
        %1331 = vdwg.mxu0
        %v1334 = vunpack.c.l.b16 %v1271
        %v1335 = vunpack.c.l.b16 %v1272
        %v1336 = vpack.c.b16 %v1335, %v1334
        %v1338 = vsel %vm1288, %v1265, 0
        %v1341 = vsel %vm1288, %v1336, 0
        %1343 = vmatpush.bf16.xpose.msra.mxu0 0
        %1344 = vmatpush.bf16.xpose.msra.mxu0 0
        %1345 = vmatpush.bf16.xpose.msra.mxu0 0
        %1346 = vmatpush.bf16.xpose.msra.mxu0 0
        %1347 = vmatpush.bf16.xpose.msra.mxu0 0
        %1348 = vmatpush.bf16.xpose.msra.mxu0 0
        %1349 = vmatpush.bf16.xpose.msra.mxu0 0
        %1350 = vmatpush.bf16.xpose.msra.mxu0 %v1341
        %1351 = vmatmul.bf16.gmra.mxu0 %v1338
        %v1352 = vpop.f32.mrf.mxu0
        %v1353 = vadd.f32 0.0, %v1352
        %v1354 = vpop.f32.mrf.mxu0
        %1355 = vdwg.mxu0
        %v1358 = vunpack.c.l.b16 %v1273
        %v1359 = vunpack.c.l.b16 %v1274
        %v1360 = vpack.c.b16 %v1359, %v1358
        %v1362 = vsel %vm1288, %v1266, 0
        %v1365 = vsel %vm1288, %v1360, 0
        %1367 = vmatpush.bf16.xpose.msra.mxu0 0
        %1368 = vmatpush.bf16.xpose.msra.mxu0 0
        %1369 = vmatpush.bf16.xpose.msra.mxu0 0
        %1370 = vmatpush.bf16.xpose.msra.mxu0 0
        %1371 = vmatpush.bf16.xpose.msra.mxu0 0
        %1372 = vmatpush.bf16.xpose.msra.mxu0 0
        %1373 = vmatpush.bf16.xpose.msra.mxu0 0
        %1374 = vmatpush.bf16.xpose.msra.mxu0 %v1365
        %1375 = vmatmul.bf16.gmra.mxu0 %v1362
        %v1376 = vpop.f32.mrf.mxu0
        %v1377 = vadd.f32 0.0, %v1376
        %v1378 = vpop.f32.mrf.mxu0
        %1379 = vdwg.mxu0
        %vm1380 = vcmask 130048
        %v1381 = vsel %vm1380, %v1305, -inf
        %1382 = vmax.xlane.f32.xlu0 %v1381
        %v1383 = vpop.xlane.xlu0 %1382
        %v1384 = vsel %vm1380, %v1329, -inf
        %1385 = vmax.xlane.f32.xlu0 %v1384
        %v1386 = vpop.xlane.xlu0 %1385
        %v1387 = vsel %vm1380, %v1353, -inf
        %1388 = vmax.xlane.f32.xlu0 %v1387
        %v1389 = vpop.xlane.xlu0 %1388
        %v1390 = vsel %vm1380, %v1377, -inf
        %1391 = vmax.xlane.f32.xlu0 %v1390
        %v1392 = vpop.xlane.xlu0 %1391
        %v1393 = vsub.f32 %v1305, %v1383
        %v1394 = vsub.f32 %v1329, %v1386
        %v1395 = vsub.f32 %v1353, %v1389
        %v1396 = vsub.f32 %v1377, %v1392
        %v1397 = vmul.f32 %v1393, 1.442695
        %v1398 = vpow.pop %v1397
        %v1399 = vmul.f32 %v1394, 1.442695
        %v1400 = vpow.pop %v1399
        %v1401 = vmul.f32 %v1395, 1.442695
        %v1402 = vpow.pop %v1401
        %v1403 = vmul.f32 %v1396, 1.442695
        %v1404 = vpow.pop %v1403
        %v1405 = vsel %vm1380, %v1398, 0.0
        %1406 = vadd.xlane.f32.xlu0 %v1405
        %v1407 = vpop.xlane.xlu0 %1406
        %v1408 = vsel %vm1380, %v1400, 0.0
        %1409 = vadd.xlane.f32.xlu0 %v1408
        %v1410 = vpop.xlane.xlu0 %1409
        %v1411 = vsel %vm1380, %v1402, 0.0
        %1412 = vadd.xlane.f32.xlu0 %v1411
        %v1413 = vpop.xlane.xlu0 %1412
        %v1414 = vsel %vm1380, %v1404, 0.0
        %1415 = vadd.xlane.f32.xlu0 %v1414
        %v1416 = vpop.xlane.xlu0 %1415
        %v1417 = vrcp.pop %v1407
        %v1418 = vrcp.pop %v1410
        %v1419 = vrcp.pop %v1413
        %v1420 = vrcp.pop %v1416
        %v1421 = vmul.f32 %v1398, %v1417
        %v1422 = vmul.f32 %v1400, %v1418
        %v1423 = vmul.f32 %v1402, %v1419
        %v1424 = vmul.f32 %v1404, %v1420
        %v1425 = vpack.c.bf16 %v1421, %v1421
        %v1426 = vpack.c.bf16 %v1422, %v1422
        %v1427 = vpack.c.bf16 %v1423, %v1423
        %v1428 = vpack.c.bf16 %v1424, %v1424
        %v1431 = vunpack.c.l.b16 %v1275
        %v1432 = vunpack.c.l.b16 %v1276
        %v1433 = vpack.c.b16 %v1432, %v1431
        %v1436 = vsel %vm1380, %v1425, 0
        %1438 = vmatpush.bf16.msra.mxu0 0
        %1439 = vmatpush.bf16.msra.mxu0 0
        %1440 = vmatpush.bf16.msra.mxu0 0
        %1441 = vmatpush.bf16.msra.mxu0 0
        %1442 = vmatpush.bf16.msra.mxu0 0
        %1443 = vmatpush.bf16.msra.mxu0 0
        %1444 = vmatpush.bf16.msra.mxu0 0
        %1445 = vmatpush.bf16.msra.mxu0 %v1433
        %1446 = vmatmul.bf16.gmra.mxu0 %v1436
        %v1447 = vpop.f32.mrf.mxu0
        %v1448 = vadd.f32 0.0, %v1447
        %v1449 = vpop.f32.mrf.mxu0
        %1450 = vdwg.mxu0
        %v1453 = vunpack.c.l.b16 %v1277
        %v1454 = vunpack.c.l.b16 %v1278
        %v1455 = vpack.c.b16 %v1454, %v1453
        %v1458 = vsel %vm1380, %v1426, 0
        %1460 = vmatpush.bf16.msra.mxu0 0
        %1461 = vmatpush.bf16.msra.mxu0 0
        %1462 = vmatpush.bf16.msra.mxu0 0
        %1463 = vmatpush.bf16.msra.mxu0 0
        %1464 = vmatpush.bf16.msra.mxu0 0
        %1465 = vmatpush.bf16.msra.mxu0 0
        %1466 = vmatpush.bf16.msra.mxu0 0
        %1467 = vmatpush.bf16.msra.mxu0 %v1455
        %1468 = vmatmul.bf16.gmra.mxu0 %v1458
        %v1469 = vpop.f32.mrf.mxu0
        %v1470 = vadd.f32 0.0, %v1469
        %v1471 = vpop.f32.mrf.mxu0
        %1472 = vdwg.mxu0
        %v1475 = vunpack.c.l.b16 %v1279
        %v1476 = vunpack.c.l.b16 %v1280
        %v1477 = vpack.c.b16 %v1476, %v1475
        %v1480 = vsel %vm1380, %v1427, 0
        %1482 = vmatpush.bf16.msra.mxu0 0
        %1483 = vmatpush.bf16.msra.mxu0 0
        %1484 = vmatpush.bf16.msra.mxu0 0
        %1485 = vmatpush.bf16.msra.mxu0 0
        %1486 = vmatpush.bf16.msra.mxu0 0
        %1487 = vmatpush.bf16.msra.mxu0 0
        %1488 = vmatpush.bf16.msra.mxu0 0
        %1489 = vmatpush.bf16.msra.mxu0 %v1477
        %1490 = vmatmul.bf16.gmra.mxu0 %v1480
        %v1491 = vpop.f32.mrf.mxu0
        %v1492 = vadd.f32 0.0, %v1491
        %v1493 = vpop.f32.mrf.mxu0
        %1494 = vdwg.mxu0
        %v1497 = vunpack.c.l.b16 %v1281
        %v1498 = vunpack.c.l.b16 %v1282
        %v1499 = vpack.c.b16 %v1498, %v1497
        %v1502 = vsel %vm1380, %v1428, 0
        %1504 = vmatpush.bf16.msra.mxu0 0
        %1505 = vmatpush.bf16.msra.mxu0 0
        %1506 = vmatpush.bf16.msra.mxu0 0
        %1507 = vmatpush.bf16.msra.mxu0 0
        %1508 = vmatpush.bf16.msra.mxu0 0
        %1509 = vmatpush.bf16.msra.mxu0 0
        %1510 = vmatpush.bf16.msra.mxu0 0
        %1511 = vmatpush.bf16.msra.mxu0 %v1499
        %1512 = vmatmul.bf16.gmra.mxu0 %v1502
        %v1513 = vpop.f32.mrf.mxu0
        %v1514 = vadd.f32 0.0, %v1513
        %v1515 = vpop.f32.mrf.mxu0
        %1516 = vdwg.mxu0
        %v1517 = vpack.c.bf16 %v1470, %v1448
        %v1518 = vpack.c.bf16 %v1514, %v1492
        %v1519 = vld [vmem:[#allocation4] sm:$0xff]
        %v1520 = vld [vmem:[#allocation4 + $0x8] sm:$0xff]
        %v1521 = vld [vmem:[#allocation4 + $0x10] sm:$0xff]
        %v1522 = vld [vmem:[#allocation4 + $0x18] sm:$0xff]
        %v1523 = vld [vmem:[%s626] sm:$0xf]
        %v1524 = vld [vmem:[%s626 + $0x4] sm:$0xf]
        %v1525 = vld [vmem:[%s626 + $0x8] sm:$0xf]
        %v1526 = vld [vmem:[%s626 + $0xc] sm:$0xf]
        %v1531 = vunpack.c.l.b16 %v1523
        %v1532 = vunpack.c.l.b16 %v1524
        %v1533 = vunpack.c.l.b16 %v1525
        %v1534 = vunpack.c.l.b16 %v1526
        %v1535 = vpack.c.b16 %v1532, %v1531
        %v1536 = vpack.c.b16 %v1534, %v1533
        %v1540 = vsel %vm1288, %v1517, 0
        %v1543 = vsel %vm1288, %v1518, 0
        %1545 = vmatpush.bf16.msra.mxu0 0
        %1546 = vmatpush.bf16.msra.mxu0 0
        %1547 = vmatpush.bf16.msra.mxu0 0
        %1548 = vmatpush.bf16.msra.mxu0 0
        %1549 = vmatpush.bf16.msra.mxu0 0
        %1550 = vmatpush.bf16.msra.mxu0 0
        %1551 = vmatpush.bf16.msra.mxu0 %v1536
        %1552 = vmatpush.bf16.msra.mxu0 %v1535
        %1553 = vmatmul.bf16.gmra.mxu0 %v1540
        %v1554 = vpop.f32.mrf.mxu0
        %v1555 = vadd.f32 0.0, %v1554
        %v1556 = vpop.f32.mrf.mxu0
        %v1557 = vadd.f32 0.0, %v1556
        %1558 = vmatmul.bf16.gmra.mxu0 %v1543
        %v1559 = vpop.f32.mrf.mxu0
        %v1560 = vadd.f32 0.0, %v1559
        %v1561 = vpop.f32.mrf.mxu0
        %v1562 = vadd.f32 0.0, %v1561
        %1563 = vdwg.mxu0
        %v1564 = vadd.f32 %v1519, %v1555
        %v1565 = vadd.f32 %v1520, %v1557
        %v1566 = vadd.f32 %v1521, %v1560
        %v1567 = vadd.f32 %v1522, %v1562
        %1568 = vst [vmem:[#allocation4] sm:$0xff] %v1564
        %1569 = vst [vmem:[#allocation4 + $0x8] sm:$0xff] %v1565
        %1570 = vst [vmem:[#allocation4 + $0x10] sm:$0xff] %v1566
        %1571 = vst [vmem:[#allocation4 + $0x18] sm:$0xff] %v1567
        %p1572 = scmp.eq.s32.totalorder %s33, 3
        // Predicated region
        $region81: #{tpu_custom_call.1} parent=75 // pred_check
          %p1573 = pneg %p1572
        $region82: #{tpu_custom_call.1} parent=75 // pred_check_branch
          %1575 = sbr.rel (%p1573) target = $region84
        $region83: #{tpu_custom_call.1} parent=75 // pred_region
          %v1576 = vld [vmem:[#allocation4] sm:$0xff]
          %v1577 = vld [vmem:[#allocation4 + $0x8] sm:$0xff]
          %v1578 = vld [vmem:[#allocation4 + $0x10] sm:$0xff]
          %v1579 = vld [vmem:[#allocation4 + $0x18] sm:$0xff]
          %v1580 = vld [vmem:[%s13] sm:$0x1]
          %v1582 = vperm.slane %v1580, 0
          %v1584 = vadd.f32 %v1576, %v1582
          %v1585 = vadd.f32 %v1577, %v1582
          %v1586 = vadd.f32 %v1578, %v1582
          %v1587 = vadd.f32 %v1579, %v1582
          %1588 = vst [vmem:[%s584] sm:$0xff] %v1584
          %1589 = vst [vmem:[%s584 + $0x8] sm:$0xff] %v1585
          %1590 = vst [vmem:[%s584 + $0x10] sm:$0xff] %v1586
          %1591 = vst [vmem:[%s584 + $0x18] sm:$0xff] %v1587
        $region84: #{tpu_custom_call.1} parent=75 // pred_fallthru
          _
        %s1592 = sand.u32 %s387, 1
        %s1593 = scalar_lea.sflag [#allocation6], %s1592
        %s1594 = sand.u32 %s387, 1
        %s1595 = smul.addr %s1594, 32
        %s1596 = scalar_lea.vmem [#allocation5], %s1595
        // Predicated region
        $region85: #{tpu_custom_call.1} parent=75 // pred_check
          %p1597 = pneg %p397
        $region86: #{tpu_custom_call.1} parent=75 // pred_check_branch
          %1599 = sbr.rel (%p1597) target = $region88
        $region87: #{tpu_custom_call.1} parent=75 // pred_region
          %s1600 = smul.u32 4, %s32
          %1602 = vsyncadd %s1593, 0
          %s1603 = smul.addr %s1600, 8
          %s1604 = scalar_lea.hbm %s14, %s1603
          %s1605 = sshll.u32 %s1596, 4
          %s1606 = int_to_ptr.vmem [resolvable:$true] %s1605
          %s1607 = sshll.u32 %s1604, 4
          %s1608 = int_to_ptr.hbm [resolvable:$true] %s1607
          %1613 = dma.vmem_to_hbm [thread:$0]  %s1606, 512, %s1608, %s1593, 128, 128, 8
        $region88: #{tpu_custom_call.1} parent=75 // pred_fallthru
          _
      $region76: #{tpu_custom_call.1} parent=5 // pred_fallthru
        _
      %p1614 = scmp.le.s32.totalorder 2, %s23
      // Predicated region
      $region89: #{tpu_custom_call.1} parent=5 // pred_check
        %p1615 = pneg %p1614
      $region90: #{tpu_custom_call.1} parent=5 // pred_check_branch
        %1617 = sbr.rel (%p1615) target = $region92
      $region91: #{tpu_custom_call.1} parent=5 // pred_region
        %s1618 = ssub.s32 %s23, 2
        // Predicated region
        $region93: #{tpu_custom_call.1} parent=91 // pred_check
          %p1619 = pneg %p403
        $region94: #{tpu_custom_call.1} parent=91 // pred_check_branch
          %1621 = sbr.rel (%p1619) target = $region96
        $region95: #{tpu_custom_call.1} parent=91 // pred_region
          %s1622 = sand.u32 %s388, 1
          %s1623 = scalar_lea.sflag [#allocation6], %s1622
          %s1624 = sand.u32 %s388, 1
          %s1625 = smul.addr %s1624, 32
          %s1626 = scalar_lea.vmem [#allocation5], %s1625
          %1628 = dma.done %s1623, 512
        $region96: #{tpu_custom_call.1} parent=91 // pred_fallthru
          _
      $region92: #{tpu_custom_call.1} parent=5 // pred_fallthru
        _
    $region6: #{tpu_custom_call.1} parent=1 // loop_footer
      %s27 = sadd.s32 1, %s23
    $region7: #{tpu_custom_call.1} parent=1 // loop_footer_branch
      %22 = sbr.rel target = $region3
    $region8: #{tpu_custom_call.1} parent=1 // loop_exit
      _
    %1629 = vsyncpa [#allocation6], 1
    %s1630 = scalar_lea.sflag [#allocation6], 1
    %1631 = vsyncpa %s1630, 1

</llo_original>
